<compile_context>
chip_gen: v5e
topology: v5e:2x2
jax: 0.10.0
libtpu: 0.0.40
codegen_flags: <defaults>
</compile_context>

<pallas_src>
import functools

import jax
import jax.numpy as jnp
from jax.experimental import pallas as pl
from jax.experimental.pallas import tpu as pltpu


def _round_up(x, m):
    return (x + m - 1) // m * m


# ---------------------------------------------------------------------------
# Kernel A: sequential GRU recurrence, Tb decode steps per grid iteration.
# ---------------------------------------------------------------------------
def gru_seq_kernel(x_ref,      # (Tb, H)  f32  pre-gathered embedding rows
                   h0_ref,     # (1, H)   f32  initial hidden
                   wx_ref,     # (H, 3H)  f32  W_ih^T, gate columns [r|z|n]
                   wh_ref,     # (H, 3H)  f32  W_hh^T, gate columns [r|z|n]
                   bx_ref,     # (1, 3H)  f32  [b_ir+b_hr | b_iz+b_hz | b_in]
                   bh_ref,     # (1, 3H)  f32  [0 | 0 | b_hn]
                   hseq_ref,   # out (Tb, H) bf16 per-step hidden states
                   hfin_ref,   # out (1, H)  f32  final hidden (VMEM-resident carry)
                   *, H, Tb, T):
    blk = pl.program_id(0)

    @pl.when(blk == 0)
    def _():
        hfin_ref[...] = h0_ref[...]

    # x path for all Tb steps in one MXU pass (no recurrence dependency).
    x_blk = jnp.maximum(x_ref[...], 0.0)                              # F.relu(embedding)
    gx_all = jnp.dot(x_blk, wx_ref[...],
                     preferred_element_type=jnp.float32) + bx_ref[...]  # (Tb, 3H)

    wh = wh_ref[...]
    bh = bh_ref[...]
    h = hfin_ref[...]                                                 # carry (1, H) f32

    # Serial recurrence over the Tb steps of this block (static unroll).
    for i in range(Tb):
        gx = gx_all[i:i + 1, :]                                       # (1, 3H)
        gh = jnp.dot(h, wh, preferred_element_type=jnp.float32) + bh  # (1, 3H)
        r = jax.nn.sigmoid(gx[:, 0:H] + gh[:, 0:H])
        z = jax.nn.sigmoid(gx[:, H:2 * H] + gh[:, H:2 * H])
        n = jnp.tanh(gx[:, 2 * H:3 * H] + r * gh[:, 2 * H:3 * H])
        h_new = (1.0 - z) * n + z * h
        if T % Tb != 0:                                               # tail-block masking
            valid = (blk * Tb + i) < T
            h_new = jnp.where(valid, h_new, h)
        h = h_new
        hseq_ref[i:i + 1, :] = h.astype(hseq_ref.dtype)

    hfin_ref[...] = h


# ---------------------------------------------------------------------------
# Kernel B: batched output projection + online logsumexp, tiled (time, vocab).
# ---------------------------------------------------------------------------
def proj_lse_kernel(h_ref,       # (Tm, H)  bf16 hidden-state time tile
                    w_ref,       # (H, Tn)  bf16 output-weight vocab tile
                    b_ref,       # (1, Tn)  f32  bias (-1e30 in padded vocab lanes)
                    logits_ref,  # out (Tm, Tn) f32 raw logits
                    lse_ref,     # out (Tm, 1)  f32 per-row logsumexp
                    m_scr,       # scratch (Tm, 1) f32 running row max
                    l_scr):      # scratch (Tm, 1) f32 running sum of exp
    j = pl.program_id(1)

    @pl.when(j == 0)
    def _():
        m_scr[...] = jnp.full_like(m_scr, -jnp.inf)
        l_scr[...] = jnp.zeros_like(l_scr)

    logits = jnp.dot(h_ref[...], w_ref[...],
                     preferred_element_type=jnp.float32) + b_ref[...]
    logits_ref[...] = logits

    m_prev = m_scr[...]
    m_new = jnp.maximum(m_prev, jnp.max(logits, axis=1, keepdims=True))
    l_scr[...] = (l_scr[...] * jnp.exp(m_prev - m_new)
                  + jnp.sum(jnp.exp(logits - m_new), axis=1, keepdims=True))
    m_scr[...] = m_new

    @pl.when(j == pl.num_programs(1) - 1)
    def _():
        lse_ref[...] = m_scr[...] + jnp.log(l_scr[...])


# ---------------------------------------------------------------------------
# Kernel C: finalize log-softmax: logp = logits - lse (fully parallel).
# ---------------------------------------------------------------------------
def logsoftmax_finalize_kernel(logits_ref, lse_ref, logp_ref):
    logp_ref[...] = logits_ref[...] - lse_ref[...]


# ---------------------------------------------------------------------------
# Parameter construction / prep (wrapper glue: transpose / fuse / pad / cast once).
# ---------------------------------------------------------------------------
def make_params(hidden_size, output_size, key):
    """Deterministic synthetic parameters matching nn.Embedding / nn.GRU / nn.Linear."""
    ks = jax.random.split(key, 7)
    H, V = hidden_size, output_size
    scale = 1.0 / jnp.sqrt(jnp.float32(H))
    return {
        "embedding": jax.random.normal(ks[0], (V, H), jnp.float32),
        "w_ih":      jax.random.uniform(ks[1], (3 * H, H), jnp.float32, -scale, scale),
        "w_hh":      jax.random.uniform(ks[2], (3 * H, H), jnp.float32, -scale, scale),
        "b_ih":      jax.random.uniform(ks[3], (3 * H,),   jnp.float32, -scale, scale),
        "b_hh":      jax.random.uniform(ks[4], (3 * H,),   jnp.float32, -scale, scale),
        "w_out":     jax.random.uniform(ks[5], (V, H),     jnp.float32, -scale, scale),
        "b_out":     jax.random.uniform(ks[6], (V,),       jnp.float32, -scale, scale),
    }


def prepare_params(params, lane=128):
    emb = params["embedding"]                       # (V, H)
    V, H = emb.shape
    vp128 = _round_up(V, lane)
    Tn = 256 if vp128 >= 256 else 128               # 256-wide N tiles for big vocab (v6e/v7x MXU)
    Vp = _round_up(V, Tn)

    # PyTorch GRU layout: w_ih/w_hh are (3H, H) with gate rows [r; z; n].
    wx = params["w_ih"].T                           # (H, 3H), columns [W_ir^T | W_iz^T | W_in^T]
    wh = params["w_hh"].T                           # (H, 3H)
    b_ih, b_hh = params["b_ih"], params["b_hh"]
    bx = jnp.concatenate([b_ih[0:H] + b_hh[0:H],
                          b_ih[H:2 * H] + b_hh[H:2 * H],
                          b_ih[2 * H:3 * H]]).reshape(1, 3 * H)
    bh = jnp.concatenate([jnp.zeros((2 * H,), jnp.float32),
                          b_hh[2 * H:3 * H]]).reshape(1, 3 * H)

    # Output projection: bf16 weights (f32 accumulation in-kernel), vocab padded to Tn.
    # Padded vocab lanes: zero weight columns + -1e30 bias so they never affect logsumexp.
    w_out = jnp.zeros((H, Vp), jnp.bfloat16).at[:, :V].set(
        params["w_out"].T.astype(jnp.bfloat16))
    b_out = jnp.full((1, Vp), -1e30, jnp.float32).at[0, :V].set(params["b_out"])

    return {"H": H, "V": V, "Vp": Vp, "Tn": Tn,
            "emb": emb, "wx": wx, "wh": wh, "bx": bx, "bh": bh,
            "w_out": w_out, "b_out": b_out}


# ---------------------------------------------------------------------------
# Wrappers
# ---------------------------------------------------------------------------
def decoder_forward_seq(tokens, hidden, prep, Tb=8):
    """tokens: (T,) int32; hidden: (1, 1, H) f32
       -> (log_probs (T, V), final hidden (1, 1, H))."""
    T = int(tokens.shape[0])
    H, V, Vp, Tn = prep["H"], prep["V"], prep["Vp"], prep["Tn"]
    Tpad = _round_up(T, Tb)
    Tm = Tb                                  # >= 8 rows per projection M tile
    nT, nV = Tpad // Tm, Vp // Tn

    # Pre-gathered embedding slab (plain XLA take; tokens are known up front).
    x = jnp.zeros((Tpad, H), jnp.float32).at[:T].set(prep["emb"][tokens.astype(jnp.int32)])
    h0 = hidden.reshape(1, H).astype(jnp.float32)

    # ---- Kernel A: GRU recurrence (sequential; Tb steps per grid iteration) ----
    hseq, hfin = pl.pallas_call(
        functools.partial(gru_seq_kernel, H=H, Tb=Tb, T=T),
        grid=(Tpad // Tb,),
        in_specs=[
            pl.BlockSpec((Tb, H), lambda i: (i, 0)),        # embedding slab block
            pl.BlockSpec((1, H), lambda i: (0, 0)),         # h0
            pl.BlockSpec((H, 3 * H), lambda i: (0, 0)),     # Wx (resident: constant index)
            pl.BlockSpec((H, 3 * H), lambda i: (0, 0)),     # Wh
            pl.BlockSpec((1, 3 * H), lambda i: (0, 0)),     # bx
            pl.BlockSpec((1, 3 * H), lambda i: (0, 0)),     # bh
        ],
        out_specs=(
            pl.BlockSpec((Tb, H), lambda i: (i, 0)),        # per-step hidden slab
            pl.BlockSpec((1, H), lambda i: (0, 0)),         # final hidden (carry)
        ),
        out_shape=(
            jax.ShapeDtypeStruct((Tpad, H), jnp.bfloat16),
            jax.ShapeDtypeStruct((1, H), jnp.float32),
        ),
        compiler_params=pltpu.CompilerParams(
            dimension_semantics=("arbitrary",)),            # recurrence is sequential
    )(x, h0, prep["wx"], prep["wh"], prep["bx"], prep["bh"])

    # VMEM budget for the projection: double-buffered blocks + scratch, never below default.
    blk_bytes = 2 * (Tm * H * 2 + H * Tn * 2 + Tn * 4 + Tm * Tn * 4 + Tm * 4) + 2 * Tm * 4
    proj_vmem = int(min(max(32 * 1024 * 1024, 2 * blk_bytes), 100 * 1024 * 1024))

    # ---- Kernel B: batched projection + online logsumexp, tiled (T, Vp) ----
    logits, lse = pl.pallas_call(
        proj_lse_kernel,
        grid=(nT, nV),
        in_specs=[
            pl.BlockSpec((Tm, H), lambda i, j: (i, 0)),     # hidden time tile
            pl.BlockSpec((H, Tn), lambda i, j: (0, j)),     # w_out vocab tile (streams)
            pl.BlockSpec((1, Tn), lambda i, j: (0, j)),     # bias vocab tile
        ],
        out_specs=(
            pl.BlockSpec((Tm, Tn), lambda i, j: (i, j)),    # raw logits
            pl.BlockSpec((Tm, 1), lambda i, j: (i, 0)),     # per-row lse (resident over j)
        ),
        out_shape=(
            jax.ShapeDtypeStruct((Tpad, Vp), jnp.float32),
            jax.ShapeDtypeStruct((Tpad, 1), jnp.float32),
        ),
        scratch_shapes=[pltpu.VMEM((Tm, 1), jnp.float32),
                        pltpu.VMEM((Tm, 1), jnp.float32)],
        compiler_params=pltpu.CompilerParams(
            dimension_semantics=("parallel", "arbitrary"),
            vmem_limit_bytes=proj_vmem),
    )(hseq, prep["w_out"], prep["b_out"])

    # ---- Kernel C: log-softmax finalize (logp = logits - lse), fully parallel ----
    logp = pl.pallas_call(
        logsoftmax_finalize_kernel,
        grid=(nT, nV),
        in_specs=[
            pl.BlockSpec((Tm, Tn), lambda i, j: (i, j)),
            pl.BlockSpec((Tm, 1), lambda i, j: (i, 0)),
        ],
        out_specs=pl.BlockSpec((Tm, Tn), lambda i, j: (i, j)),
        out_shape=jax.ShapeDtypeStruct((Tpad, Vp), jnp.float32),
        compiler_params=pltpu.CompilerParams(
            dimension_semantics=("parallel", "parallel")),
    )(logits, lse)

    return logp[:T, :V], hfin.reshape(1, 1, H)


def decoder_forward(token, hidden, prep):
    """Exact module semantics: one token -> (log_probs (1, V), hidden (1, 1, H))."""
    logp, h = decoder_forward_seq(token.reshape(1), hidden, prep)
    return logp, h


# ---------------------------------------------------------------------------
# Pure-JAX f32 reference mirroring the PyTorch forward (one step).
# ---------------------------------------------------------------------------
def decoder_step_ref(token, hidden, params):
    emb = params["embedding"]
    H = emb.shape[1]
    x = jnp.maximum(emb[token[0]], 0.0).reshape(1, H)
    h = hidden.reshape(1, H)
    gx = x @ params["w_ih"].T + params["b_ih"]
    gh = h @ params["w_hh"].T + params["b_hh"]
    r = jax.nn.sigmoid(gx[:, :H] + gh[:, :H])
    z = jax.nn.sigmoid(gx[:, H:2 * H] + gh[:, H:2 * H])
    n = jnp.tanh(gx[:, 2 * H:] + r * gh[:, 2 * H:])
    h_new = (1.0 - z) * n + z * h
    logits = h_new @ params["w_out"].T + params["b_out"]
    return jax.nn.log_softmax(logits, axis=1), h_new.reshape(1, 1, H)


if __name__ == "__main__":
    hidden_size = 32
    output_size = 50   # vocab size
    T = 20             # exercises multiple grid blocks (Tb=8 -> 3 blocks) + tail masking

    key = jax.random.PRNGKey(0)
    pkey, tkey = jax.random.split(key)
    params = make_params(hidden_size, output_size, pkey)
    prep = prepare_params(params)

    tokens = jax.random.randint(tkey, (T,), 0, output_size, dtype=jnp.int32)
    hidden = jnp.zeros((1, 1, hidden_size), jnp.float32)   # initHidden()

    # Multi-step decode: recurrence kernel + batched projection kernels.
    logp, h_final = decoder_forward_seq(tokens, hidden, prep)
    jax.block_until_ready((logp, h_final))

    # f32 reference: apply the module step-by-step.
    ref_logps, h_ref = [], hidden
    for t in range(T):
        lp, h_ref = decoder_step_ref(tokens[t:t + 1], h_ref, params)
        ref_logps.append(lp)
    ref_logp = jnp.concatenate(ref_logps, axis=0)

    assert logp.shape == (T, output_size)
    assert h_final.shape == (1, 1, hidden_size)
    # bf16 output projection -> loosened tolerance on log-probs.
    assert jnp.allclose(logp, ref_logp, atol=5e-2, rtol=5e-2), "log-prob mismatch"
    assert jnp.allclose(h_final, h_ref, atol=5e-2, rtol=5e-2), "hidden mismatch"

    # Single-step call matching the module's forward signature exactly.
    lp1, h1 = decoder_forward(tokens[0:1], hidden, prep)
    jax.block_until_ready((lp1, h1))
    ref_lp1, ref_h1 = decoder_step_ref(tokens[0:1], hidden, params)
    assert jnp.allclose(lp1, ref_lp1, atol=5e-2, rtol=5e-2)
    assert jnp.allclose(h1, ref_h1, atol=5e-2, rtol=5e-2)

    print("KERNEL_OK")
</pallas_src>

<mosaic_0001>
module attributes {stable_mosaic.version = 11 : i64} {
  func.func @gru_seq_kernel(%arg0: i32, %arg1: memref<8x32xf32, #tpu.memory_space<vmem>>, %arg2: memref<1x32xf32, #tpu.memory_space<vmem>>, %arg3: memref<32x96xf32, #tpu.memory_space<vmem>>, %arg4: memref<32x96xf32, #tpu.memory_space<vmem>>, %arg5: memref<1x96xf32, #tpu.memory_space<vmem>>, %arg6: memref<1x96xf32, #tpu.memory_space<vmem>>, %arg7: memref<8x32xbf16, #tpu.memory_space<vmem>>, %arg8: memref<1x32xf32, #tpu.memory_space<vmem>>) attributes {dimension_semantics = [#tpu.dimension_semantics<arbitrary>], iteration_bounds = array<i64: 3>, scalar_prefetch = 0 : i64, scratch_operands = 0 : i64, tpu.core_type = #tpu.core_type<tc>, window_params = [{transform_indices = @transform_0, window_bounds = array<i64: 8, 32>}, {pipeline_mode = #tpu.pipeline_mode<synchronous>, transform_indices = @transform_1, window_bounds = array<i64: 1, 32>}, {pipeline_mode = #tpu.pipeline_mode<synchronous>, transform_indices = @transform_2, window_bounds = array<i64: 32, 96>}, {pipeline_mode = #tpu.pipeline_mode<synchronous>, transform_indices = @transform_3, window_bounds = array<i64: 32, 96>}, {pipeline_mode = #tpu.pipeline_mode<synchronous>, transform_indices = @transform_4, window_bounds = array<i64: 1, 96>}, {pipeline_mode = #tpu.pipeline_mode<synchronous>, transform_indices = @transform_5, window_bounds = array<i64: 1, 96>}, {transform_indices = @transform_6, window_bounds = array<i64: 8, 32>}, {pipeline_mode = #tpu.pipeline_mode<synchronous>, transform_indices = @transform_7, window_bounds = array<i64: 1, 32>}]} {
    %c0_i32 = arith.constant 0 : i32
    %0 = arith.cmpi eq, %arg0, %c0_i32 : i32
    %1 = arith.extui %0 : i1 to i32
    %c0_i32_0 = arith.constant 0 : i32
    %2 = arith.cmpi ne, %1, %c0_i32_0 : i32
    scf.if %2 {
      %c0_71 = arith.constant 0 : index
      %c0_72 = arith.constant 0 : index
      %295 = vector.load %arg2[%c0_71, %c0_72] : memref<1x32xf32, #tpu.memory_space<vmem>>, vector<1x32xf32>
      %c0_73 = arith.constant 0 : index
      %c0_74 = arith.constant 0 : index
      %296 = vector.load %arg8[%c0_73, %c0_74] : memref<1x32xf32, #tpu.memory_space<vmem>>, vector<1x32xf32>
      tpu.vector_store %arg8[%c0_73, %c0_74], %295 {strides = array<i32>} : memref<1x32xf32, #tpu.memory_space<vmem>>, vector<1x32xf32>,
    } else {
    }
    %c0 = arith.constant 0 : index
    %c0_1 = arith.constant 0 : index
    %3 = vector.load %arg1[%c0, %c0_1] : memref<8x32xf32, #tpu.memory_space<vmem>>, vector<8x32xf32>
    %cst = arith.constant 0.000000e+00 : f32
    %4 = vector.broadcast %cst : f32 to vector<8x32xf32>
    %5 = arith.maximumf %3, %4 : vector<8x32xf32>
    %c0_2 = arith.constant 0 : index
    %c0_3 = arith.constant 0 : index
    %6 = vector.load %arg3[%c0_2, %c0_3] : memref<32x96xf32, #tpu.memory_space<vmem>>, vector<32x96xf32>
    %cst_4 = arith.constant dense<0.000000e+00> : vector<8x96xf32>
    %7 = tpu.matmul %5, %6, %cst_4 {dimension_numbers = #tpu.dot_dimension_numbers<[1], [0], [0], [1], [0, 0, 1, 1], [], []>} : vector<8x32xf32>, vector<32x96xf32>, vector<8x96xf32> -> vector<8x96xf32>
    %c0_5 = arith.constant 0 : index
    %c0_6 = arith.constant 0 : index
    %8 = vector.load %arg5[%c0_5, %c0_6] : memref<1x96xf32, #tpu.memory_space<vmem>>, vector<1x96xf32>
    %9 = vector.broadcast %8 : vector<1x96xf32> to vector<8x96xf32>
    %10 = arith.addf %7, %9 : vector<8x96xf32>
    %c0_7 = arith.constant 0 : index
    %c0_8 = arith.constant 0 : index
    %11 = vector.load %arg4[%c0_7, %c0_8] : memref<32x96xf32, #tpu.memory_space<vmem>>, vector<32x96xf32>
    %c0_9 = arith.constant 0 : index
    %c0_10 = arith.constant 0 : index
    %12 = vector.load %arg6[%c0_9, %c0_10] : memref<1x96xf32, #tpu.memory_space<vmem>>, vector<1x96xf32>
    %c0_11 = arith.constant 0 : index
    %c0_12 = arith.constant 0 : index
    %13 = vector.load %arg8[%c0_11, %c0_12] : memref<1x32xf32, #tpu.memory_space<vmem>>, vector<1x32xf32>
    %14 = vector.extract_strided_slice %10 {offsets = [0, 0], sizes = [1, 96], strides = [1, 1]} : vector<8x96xf32> to vector<1x96xf32>
    %cst_13 = arith.constant dense<0.000000e+00> : vector<1x96xf32>
    %15 = tpu.matmul %13, %11, %cst_13 {dimension_numbers = #tpu.dot_dimension_numbers<[1], [0], [0], [1], [0, 0, 1, 1], [], []>} : vector<1x32xf32>, vector<32x96xf32>, vector<1x96xf32> -> vector<1x96xf32>
    %16 = arith.addf %15, %12 : vector<1x96xf32>
    %17 = vector.extract_strided_slice %14 {offsets = [0, 0], sizes = [1, 32], strides = [1, 1]} : vector<1x96xf32> to vector<1x32xf32>
    %18 = vector.extract_strided_slice %16 {offsets = [0, 0], sizes = [1, 32], strides = [1, 1]} : vector<1x96xf32> to vector<1x32xf32>
    %19 = arith.addf %17, %18 : vector<1x32xf32>
    %20 = arith.negf %19 : vector<1x32xf32>
    %21 = math.exp %20 : vector<1x32xf32>
    %cst_14 = arith.constant 1.000000e+00 : f32
    %22 = vector.broadcast %cst_14 : f32 to vector<1x32xf32>
    %23 = arith.addf %22, %21 : vector<1x32xf32>
    %24 = arith.divf %22, %23 : vector<1x32xf32>
    %25 = vector.extract_strided_slice %14 {offsets = [0, 32], sizes = [1, 32], strides = [1, 1]} : vector<1x96xf32> to vector<1x32xf32>
    %26 = vector.extract_strided_slice %16 {offsets = [0, 32], sizes = [1, 32], strides = [1, 1]} : vector<1x96xf32> to vector<1x32xf32>
    %27 = arith.addf %25, %26 : vector<1x32xf32>
    %28 = arith.negf %27 : vector<1x32xf32>
    %29 = math.exp %28 : vector<1x32xf32>
    %cst_15 = arith.constant 1.000000e+00 : f32
    %30 = vector.broadcast %cst_15 : f32 to vector<1x32xf32>
    %31 = arith.addf %30, %29 : vector<1x32xf32>
    %32 = arith.divf %30, %31 : vector<1x32xf32>
    %33 = vector.extract_strided_slice %14 {offsets = [0, 64], sizes = [1, 32], strides = [1, 1]} : vector<1x96xf32> to vector<1x32xf32>
    %34 = vector.extract_strided_slice %16 {offsets = [0, 64], sizes = [1, 32], strides = [1, 1]} : vector<1x96xf32> to vector<1x32xf32>
    %35 = arith.mulf %24, %34 : vector<1x32xf32>
    %36 = arith.addf %33, %35 : vector<1x32xf32>
    %37 = math.tanh %36 : vector<1x32xf32>
    %cst_16 = arith.constant 1.000000e+00 : f32
    %38 = vector.broadcast %cst_16 : f32 to vector<1x32xf32>
    %39 = arith.subf %38, %32 : vector<1x32xf32>
    %40 = arith.mulf %39, %37 : vector<1x32xf32>
    %41 = arith.mulf %32, %13 : vector<1x32xf32>
    %42 = arith.addf %40, %41 : vector<1x32xf32>
    %c8_i32 = arith.constant 8 : i32
    %43 = arith.muli %arg0, %c8_i32 : i32
    %c0_i32_17 = arith.constant 0 : i32
    %44 = arith.addi %43, %c0_i32_17 : i32
    %c20_i32 = arith.constant 20 : i32
    %45 = arith.cmpi slt, %44, %c20_i32 : i32
    %46 = arith.select %45, %42, %13 : vector<1x32xf32>
    %47 = arith.truncf %46 : vector<1x32xf32> to vector<1x32xbf16>
    %c0_18 = arith.constant 0 : index
    %c0_19 = arith.constant 0 : index
    %48 = vector.load %arg7[%c0_18, %c0_19] : memref<8x32xbf16, #tpu.memory_space<vmem>>, vector<1x32xbf16>
    tpu.vector_store %arg7[%c0_18, %c0_19], %47 {strides = array<i32>} : memref<8x32xbf16, #tpu.memory_space<vmem>>, vector<1x32xbf16>,
    %49 = vector.extract_strided_slice %10 {offsets = [1, 0], sizes = [1, 96], strides = [1, 1]} : vector<8x96xf32> to vector<1x96xf32>
    %cst_20 = arith.constant dense<0.000000e+00> : vector<1x96xf32>
    %50 = tpu.matmul %46, %11, %cst_20 {dimension_numbers = #tpu.dot_dimension_numbers<[1], [0], [0], [1], [0, 0, 1, 1], [], []>} : vector<1x32xf32>, vector<32x96xf32>, vector<1x96xf32> -> vector<1x96xf32>
    %51 = arith.addf %50, %12 : vector<1x96xf32>
    %52 = vector.extract_strided_slice %49 {offsets = [0, 0], sizes = [1, 32], strides = [1, 1]} : vector<1x96xf32> to vector<1x32xf32>
    %53 = vector.extract_strided_slice %51 {offsets = [0, 0], sizes = [1, 32], strides = [1, 1]} : vector<1x96xf32> to vector<1x32xf32>
    %54 = arith.addf %52, %53 : vector<1x32xf32>
    %55 = arith.negf %54 : vector<1x32xf32>
    %56 = math.exp %55 : vector<1x32xf32>
    %cst_21 = arith.constant 1.000000e+00 : f32
    %57 = vector.broadcast %cst_21 : f32 to vector<1x32xf32>
    %58 = arith.addf %57, %56 : vector<1x32xf32>
    %59 = arith.divf %57, %58 : vector<1x32xf32>
    %60 = vector.extract_strided_slice %49 {offsets = [0, 32], sizes = [1, 32], strides = [1, 1]} : vector<1x96xf32> to vector<1x32xf32>
    %61 = vector.extract_strided_slice %51 {offsets = [0, 32], sizes = [1, 32], strides = [1, 1]} : vector<1x96xf32> to vector<1x32xf32>
    %62 = arith.addf %60, %61 : vector<1x32xf32>
    %63 = arith.negf %62 : vector<1x32xf32>
    %64 = math.exp %63 : vector<1x32xf32>
    %cst_22 = arith.constant 1.000000e+00 : f32
    %65 = vector.broadcast %cst_22 : f32 to vector<1x32xf32>
    %66 = arith.addf %65, %64 : vector<1x32xf32>
    %67 = arith.divf %65, %66 : vector<1x32xf32>
    %68 = vector.extract_strided_slice %49 {offsets = [0, 64], sizes = [1, 32], strides = [1, 1]} : vector<1x96xf32> to vector<1x32xf32>
    %69 = vector.extract_strided_slice %51 {offsets = [0, 64], sizes = [1, 32], strides = [1, 1]} : vector<1x96xf32> to vector<1x32xf32>
    %70 = arith.mulf %59, %69 : vector<1x32xf32>
    %71 = arith.addf %68, %70 : vector<1x32xf32>
    %72 = math.tanh %71 : vector<1x32xf32>
    %cst_23 = arith.constant 1.000000e+00 : f32
    %73 = vector.broadcast %cst_23 : f32 to vector<1x32xf32>
    %74 = arith.subf %73, %67 : vector<1x32xf32>
    %75 = arith.mulf %74, %72 : vector<1x32xf32>
    %76 = arith.mulf %67, %46 : vector<1x32xf32>
    %77 = arith.addf %75, %76 : vector<1x32xf32>
    %c8_i32_24 = arith.constant 8 : i32
    %78 = arith.muli %arg0, %c8_i32_24 : i32
    %c1_i32 = arith.constant 1 : i32
    %79 = arith.addi %78, %c1_i32 : i32
    %c20_i32_25 = arith.constant 20 : i32
    %80 = arith.cmpi slt, %79, %c20_i32_25 : i32
    %81 = arith.select %80, %77, %46 : vector<1x32xf32>
    %82 = arith.truncf %81 : vector<1x32xf32> to vector<1x32xbf16>
    %c1 = arith.constant 1 : index
    %c0_26 = arith.constant 0 : index
    %83 = vector.load %arg7[%c1, %c0_26] : memref<8x32xbf16, #tpu.memory_space<vmem>>, vector<1x32xbf16>
    tpu.vector_store %arg7[%c1, %c0_26], %82 {strides = array<i32>} : memref<8x32xbf16, #tpu.memory_space<vmem>>, vector<1x32xbf16>,
    %84 = vector.extract_strided_slice %10 {offsets = [2, 0], sizes = [1, 96], strides = [1, 1]} : vector<8x96xf32> to vector<1x96xf32>
    %cst_27 = arith.constant dense<0.000000e+00> : vector<1x96xf32>
    %85 = tpu.matmul %81, %11, %cst_27 {dimension_numbers = #tpu.dot_dimension_numbers<[1], [0], [0], [1], [0, 0, 1, 1], [], []>} : vector<1x32xf32>, vector<32x96xf32>, vector<1x96xf32> -> vector<1x96xf32>
    %86 = arith.addf %85, %12 : vector<1x96xf32>
    %87 = vector.extract_strided_slice %84 {offsets = [0, 0], sizes = [1, 32], strides = [1, 1]} : vector<1x96xf32> to vector<1x32xf32>
    %88 = vector.extract_strided_slice %86 {offsets = [0, 0], sizes = [1, 32], strides = [1, 1]} : vector<1x96xf32> to vector<1x32xf32>
    %89 = arith.addf %87, %88 : vector<1x32xf32>
    %90 = arith.negf %89 : vector<1x32xf32>
    %91 = math.exp %90 : vector<1x32xf32>
    %cst_28 = arith.constant 1.000000e+00 : f32
    %92 = vector.broadcast %cst_28 : f32 to vector<1x32xf32>
    %93 = arith.addf %92, %91 : vector<1x32xf32>
    %94 = arith.divf %92, %93 : vector<1x32xf32>
    %95 = vector.extract_strided_slice %84 {offsets = [0, 32], sizes = [1, 32], strides = [1, 1]} : vector<1x96xf32> to vector<1x32xf32>
    %96 = vector.extract_strided_slice %86 {offsets = [0, 32], sizes = [1, 32], strides = [1, 1]} : vector<1x96xf32> to vector<1x32xf32>
    %97 = arith.addf %95, %96 : vector<1x32xf32>
    %98 = arith.negf %97 : vector<1x32xf32>
    %99 = math.exp %98 : vector<1x32xf32>
    %cst_29 = arith.constant 1.000000e+00 : f32
    %100 = vector.broadcast %cst_29 : f32 to vector<1x32xf32>
    %101 = arith.addf %100, %99 : vector<1x32xf32>
    %102 = arith.divf %100, %101 : vector<1x32xf32>
    %103 = vector.extract_strided_slice %84 {offsets = [0, 64], sizes = [1, 32], strides = [1, 1]} : vector<1x96xf32> to vector<1x32xf32>
    %104 = vector.extract_strided_slice %86 {offsets = [0, 64], sizes = [1, 32], strides = [1, 1]} : vector<1x96xf32> to vector<1x32xf32>
    %105 = arith.mulf %94, %104 : vector<1x32xf32>
    %106 = arith.addf %103, %105 : vector<1x32xf32>
    %107 = math.tanh %106 : vector<1x32xf32>
    %cst_30 = arith.constant 1.000000e+00 : f32
    %108 = vector.broadcast %cst_30 : f32 to vector<1x32xf32>
    %109 = arith.subf %108, %102 : vector<1x32xf32>
    %110 = arith.mulf %109, %107 : vector<1x32xf32>
    %111 = arith.mulf %102, %81 : vector<1x32xf32>
    %112 = arith.addf %110, %111 : vector<1x32xf32>
    %c8_i32_31 = arith.constant 8 : i32
    %113 = arith.muli %arg0, %c8_i32_31 : i32
    %c2_i32 = arith.constant 2 : i32
    %114 = arith.addi %113, %c2_i32 : i32
    %c20_i32_32 = arith.constant 20 : i32
    %115 = arith.cmpi slt, %114, %c20_i32_32 : i32
    %116 = arith.select %115, %112, %81 : vector<1x32xf32>
    %117 = arith.truncf %116 : vector<1x32xf32> to vector<1x32xbf16>
    %c2 = arith.constant 2 : index
    %c0_33 = arith.constant 0 : index
    %118 = vector.load %arg7[%c2, %c0_33] : memref<8x32xbf16, #tpu.memory_space<vmem>>, vector<1x32xbf16>
    tpu.vector_store %arg7[%c2, %c0_33], %117 {strides = array<i32>} : memref<8x32xbf16, #tpu.memory_space<vmem>>, vector<1x32xbf16>,
    %119 = vector.extract_strided_slice %10 {offsets = [3, 0], sizes = [1, 96], strides = [1, 1]} : vector<8x96xf32> to vector<1x96xf32>
    %cst_34 = arith.constant dense<0.000000e+00> : vector<1x96xf32>
    %120 = tpu.matmul %116, %11, %cst_34 {dimension_numbers = #tpu.dot_dimension_numbers<[1], [0], [0], [1], [0, 0, 1, 1], [], []>} : vector<1x32xf32>, vector<32x96xf32>, vector<1x96xf32> -> vector<1x96xf32>
    %121 = arith.addf %120, %12 : vector<1x96xf32>
    %122 = vector.extract_strided_slice %119 {offsets = [0, 0], sizes = [1, 32], strides = [1, 1]} : vector<1x96xf32> to vector<1x32xf32>
    %123 = vector.extract_strided_slice %121 {offsets = [0, 0], sizes = [1, 32], strides = [1, 1]} : vector<1x96xf32> to vector<1x32xf32>
    %124 = arith.addf %122, %123 : vector<1x32xf32>
    %125 = arith.negf %124 : vector<1x32xf32>
    %126 = math.exp %125 : vector<1x32xf32>
    %cst_35 = arith.constant 1.000000e+00 : f32
    %127 = vector.broadcast %cst_35 : f32 to vector<1x32xf32>
    %128 = arith.addf %127, %126 : vector<1x32xf32>
    %129 = arith.divf %127, %128 : vector<1x32xf32>
    %130 = vector.extract_strided_slice %119 {offsets = [0, 32], sizes = [1, 32], strides = [1, 1]} : vector<1x96xf32> to vector<1x32xf32>
    %131 = vector.extract_strided_slice %121 {offsets = [0, 32], sizes = [1, 32], strides = [1, 1]} : vector<1x96xf32> to vector<1x32xf32>
    %132 = arith.addf %130, %131 : vector<1x32xf32>
    %133 = arith.negf %132 : vector<1x32xf32>
    %134 = math.exp %133 : vector<1x32xf32>
    %cst_36 = arith.constant 1.000000e+00 : f32
    %135 = vector.broadcast %cst_36 : f32 to vector<1x32xf32>
    %136 = arith.addf %135, %134 : vector<1x32xf32>
    %137 = arith.divf %135, %136 : vector<1x32xf32>
    %138 = vector.extract_strided_slice %119 {offsets = [0, 64], sizes = [1, 32], strides = [1, 1]} : vector<1x96xf32> to vector<1x32xf32>
    %139 = vector.extract_strided_slice %121 {offsets = [0, 64], sizes = [1, 32], strides = [1, 1]} : vector<1x96xf32> to vector<1x32xf32>
    %140 = arith.mulf %129, %139 : vector<1x32xf32>
    %141 = arith.addf %138, %140 : vector<1x32xf32>
    %142 = math.tanh %141 : vector<1x32xf32>
    %cst_37 = arith.constant 1.000000e+00 : f32
    %143 = vector.broadcast %cst_37 : f32 to vector<1x32xf32>
    %144 = arith.subf %143, %137 : vector<1x32xf32>
    %145 = arith.mulf %144, %142 : vector<1x32xf32>
    %146 = arith.mulf %137, %116 : vector<1x32xf32>
    %147 = arith.addf %145, %146 : vector<1x32xf32>
    %c8_i32_38 = arith.constant 8 : i32
    %148 = arith.muli %arg0, %c8_i32_38 : i32
    %c3_i32 = arith.constant 3 : i32
    %149 = arith.addi %148, %c3_i32 : i32
    %c20_i32_39 = arith.constant 20 : i32
    %150 = arith.cmpi slt, %149, %c20_i32_39 : i32
    %151 = arith.select %150, %147, %116 : vector<1x32xf32>
    %152 = arith.truncf %151 : vector<1x32xf32> to vector<1x32xbf16>
    %c3 = arith.constant 3 : index
    %c0_40 = arith.constant 0 : index
    %153 = vector.load %arg7[%c3, %c0_40] : memref<8x32xbf16, #tpu.memory_space<vmem>>, vector<1x32xbf16>
    tpu.vector_store %arg7[%c3, %c0_40], %152 {strides = array<i32>} : memref<8x32xbf16, #tpu.memory_space<vmem>>, vector<1x32xbf16>,
    %154 = vector.extract_strided_slice %10 {offsets = [4, 0], sizes = [1, 96], strides = [1, 1]} : vector<8x96xf32> to vector<1x96xf32>
    %cst_41 = arith.constant dense<0.000000e+00> : vector<1x96xf32>
    %155 = tpu.matmul %151, %11, %cst_41 {dimension_numbers = #tpu.dot_dimension_numbers<[1], [0], [0], [1], [0, 0, 1, 1], [], []>} : vector<1x32xf32>, vector<32x96xf32>, vector<1x96xf32> -> vector<1x96xf32>
    %156 = arith.addf %155, %12 : vector<1x96xf32>
    %157 = vector.extract_strided_slice %154 {offsets = [0, 0], sizes = [1, 32], strides = [1, 1]} : vector<1x96xf32> to vector<1x32xf32>
    %158 = vector.extract_strided_slice %156 {offsets = [0, 0], sizes = [1, 32], strides = [1, 1]} : vector<1x96xf32> to vector<1x32xf32>
    %159 = arith.addf %157, %158 : vector<1x32xf32>
    %160 = arith.negf %159 : vector<1x32xf32>
    %161 = math.exp %160 : vector<1x32xf32>
    %cst_42 = arith.constant 1.000000e+00 : f32
    %162 = vector.broadcast %cst_42 : f32 to vector<1x32xf32>
    %163 = arith.addf %162, %161 : vector<1x32xf32>
    %164 = arith.divf %162, %163 : vector<1x32xf32>
    %165 = vector.extract_strided_slice %154 {offsets = [0, 32], sizes = [1, 32], strides = [1, 1]} : vector<1x96xf32> to vector<1x32xf32>
    %166 = vector.extract_strided_slice %156 {offsets = [0, 32], sizes = [1, 32], strides = [1, 1]} : vector<1x96xf32> to vector<1x32xf32>
    %167 = arith.addf %165, %166 : vector<1x32xf32>
    %168 = arith.negf %167 : vector<1x32xf32>
    %169 = math.exp %168 : vector<1x32xf32>
    %cst_43 = arith.constant 1.000000e+00 : f32
    %170 = vector.broadcast %cst_43 : f32 to vector<1x32xf32>
    %171 = arith.addf %170, %169 : vector<1x32xf32>
    %172 = arith.divf %170, %171 : vector<1x32xf32>
    %173 = vector.extract_strided_slice %154 {offsets = [0, 64], sizes = [1, 32], strides = [1, 1]} : vector<1x96xf32> to vector<1x32xf32>
    %174 = vector.extract_strided_slice %156 {offsets = [0, 64], sizes = [1, 32], strides = [1, 1]} : vector<1x96xf32> to vector<1x32xf32>
    %175 = arith.mulf %164, %174 : vector<1x32xf32>
    %176 = arith.addf %173, %175 : vector<1x32xf32>
    %177 = math.tanh %176 : vector<1x32xf32>
    %cst_44 = arith.constant 1.000000e+00 : f32
    %178 = vector.broadcast %cst_44 : f32 to vector<1x32xf32>
    %179 = arith.subf %178, %172 : vector<1x32xf32>
    %180 = arith.mulf %179, %177 : vector<1x32xf32>
    %181 = arith.mulf %172, %151 : vector<1x32xf32>
    %182 = arith.addf %180, %181 : vector<1x32xf32>
    %c8_i32_45 = arith.constant 8 : i32
    %183 = arith.muli %arg0, %c8_i32_45 : i32
    %c4_i32 = arith.constant 4 : i32
    %184 = arith.addi %183, %c4_i32 : i32
    %c20_i32_46 = arith.constant 20 : i32
    %185 = arith.cmpi slt, %184, %c20_i32_46 : i32
    %186 = arith.select %185, %182, %151 : vector<1x32xf32>
    %187 = arith.truncf %186 : vector<1x32xf32> to vector<1x32xbf16>
    %c4 = arith.constant 4 : index
    %c0_47 = arith.constant 0 : index
    %188 = vector.load %arg7[%c4, %c0_47] : memref<8x32xbf16, #tpu.memory_space<vmem>>, vector<1x32xbf16>
    tpu.vector_store %arg7[%c4, %c0_47], %187 {strides = array<i32>} : memref<8x32xbf16, #tpu.memory_space<vmem>>, vector<1x32xbf16>,
    %189 = vector.extract_strided_slice %10 {offsets = [5, 0], sizes = [1, 96], strides = [1, 1]} : vector<8x96xf32> to vector<1x96xf32>
    %cst_48 = arith.constant dense<0.000000e+00> : vector<1x96xf32>
    %190 = tpu.matmul %186, %11, %cst_48 {dimension_numbers = #tpu.dot_dimension_numbers<[1], [0], [0], [1], [0, 0, 1, 1], [], []>} : vector<1x32xf32>, vector<32x96xf32>, vector<1x96xf32> -> vector<1x96xf32>
    %191 = arith.addf %190, %12 : vector<1x96xf32>
    %192 = vector.extract_strided_slice %189 {offsets = [0, 0], sizes = [1, 32], strides = [1, 1]} : vector<1x96xf32> to vector<1x32xf32>
    %193 = vector.extract_strided_slice %191 {offsets = [0, 0], sizes = [1, 32], strides = [1, 1]} : vector<1x96xf32> to vector<1x32xf32>
    %194 = arith.addf %192, %193 : vector<1x32xf32>
    %195 = arith.negf %194 : vector<1x32xf32>
    %196 = math.exp %195 : vector<1x32xf32>
    %cst_49 = arith.constant 1.000000e+00 : f32
    %197 = vector.broadcast %cst_49 : f32 to vector<1x32xf32>
    %198 = arith.addf %197, %196 : vector<1x32xf32>
    %199 = arith.divf %197, %198 : vector<1x32xf32>
    %200 = vector.extract_strided_slice %189 {offsets = [0, 32], sizes = [1, 32], strides = [1, 1]} : vector<1x96xf32> to vector<1x32xf32>
    %201 = vector.extract_strided_slice %191 {offsets = [0, 32], sizes = [1, 32], strides = [1, 1]} : vector<1x96xf32> to vector<1x32xf32>
    %202 = arith.addf %200, %201 : vector<1x32xf32>
    %203 = arith.negf %202 : vector<1x32xf32>
    %204 = math.exp %203 : vector<1x32xf32>
    %cst_50 = arith.constant 1.000000e+00 : f32
    %205 = vector.broadcast %cst_50 : f32 to vector<1x32xf32>
    %206 = arith.addf %205, %204 : vector<1x32xf32>
    %207 = arith.divf %205, %206 : vector<1x32xf32>
    %208 = vector.extract_strided_slice %189 {offsets = [0, 64], sizes = [1, 32], strides = [1, 1]} : vector<1x96xf32> to vector<1x32xf32>
    %209 = vector.extract_strided_slice %191 {offsets = [0, 64], sizes = [1, 32], strides = [1, 1]} : vector<1x96xf32> to vector<1x32xf32>
    %210 = arith.mulf %199, %209 : vector<1x32xf32>
    %211 = arith.addf %208, %210 : vector<1x32xf32>
    %212 = math.tanh %211 : vector<1x32xf32>
    %cst_51 = arith.constant 1.000000e+00 : f32
    %213 = vector.broadcast %cst_51 : f32 to vector<1x32xf32>
    %214 = arith.subf %213, %207 : vector<1x32xf32>
    %215 = arith.mulf %214, %212 : vector<1x32xf32>
    %216 = arith.mulf %207, %186 : vector<1x32xf32>
    %217 = arith.addf %215, %216 : vector<1x32xf32>
    %c8_i32_52 = arith.constant 8 : i32
    %218 = arith.muli %arg0, %c8_i32_52 : i32
    %c5_i32 = arith.constant 5 : i32
    %219 = arith.addi %218, %c5_i32 : i32
    %c20_i32_53 = arith.constant 20 : i32
    %220 = arith.cmpi slt, %219, %c20_i32_53 : i32
    %221 = arith.select %220, %217, %186 : vector<1x32xf32>
    %222 = arith.truncf %221 : vector<1x32xf32> to vector<1x32xbf16>
    %c5 = arith.constant 5 : index
    %c0_54 = arith.constant 0 : index
    %223 = vector.load %arg7[%c5, %c0_54] : memref<8x32xbf16, #tpu.memory_space<vmem>>, vector<1x32xbf16>
    tpu.vector_store %arg7[%c5, %c0_54], %222 {strides = array<i32>} : memref<8x32xbf16, #tpu.memory_space<vmem>>, vector<1x32xbf16>,
    %224 = vector.extract_strided_slice %10 {offsets = [6, 0], sizes = [1, 96], strides = [1, 1]} : vector<8x96xf32> to vector<1x96xf32>
    %cst_55 = arith.constant dense<0.000000e+00> : vector<1x96xf32>
    %225 = tpu.matmul %221, %11, %cst_55 {dimension_numbers = #tpu.dot_dimension_numbers<[1], [0], [0], [1], [0, 0, 1, 1], [], []>} : vector<1x32xf32>, vector<32x96xf32>, vector<1x96xf32> -> vector<1x96xf32>
    %226 = arith.addf %225, %12 : vector<1x96xf32>
    %227 = vector.extract_strided_slice %224 {offsets = [0, 0], sizes = [1, 32], strides = [1, 1]} : vector<1x96xf32> to vector<1x32xf32>
    %228 = vector.extract_strided_slice %226 {offsets = [0, 0], sizes = [1, 32], strides = [1, 1]} : vector<1x96xf32> to vector<1x32xf32>
    %229 = arith.addf %227, %228 : vector<1x32xf32>
    %230 = arith.negf %229 : vector<1x32xf32>
    %231 = math.exp %230 : vector<1x32xf32>
    %cst_56 = arith.constant 1.000000e+00 : f32
    %232 = vector.broadcast %cst_56 : f32 to vector<1x32xf32>
    %233 = arith.addf %232, %231 : vector<1x32xf32>
    %234 = arith.divf %232, %233 : vector<1x32xf32>
    %235 = vector.extract_strided_slice %224 {offsets = [0, 32], sizes = [1, 32], strides = [1, 1]} : vector<1x96xf32> to vector<1x32xf32>
    %236 = vector.extract_strided_slice %226 {offsets = [0, 32], sizes = [1, 32], strides = [1, 1]} : vector<1x96xf32> to vector<1x32xf32>
    %237 = arith.addf %235, %236 : vector<1x32xf32>
    %238 = arith.negf %237 : vector<1x32xf32>
    %239 = math.exp %238 : vector<1x32xf32>
    %cst_57 = arith.constant 1.000000e+00 : f32
    %240 = vector.broadcast %cst_57 : f32 to vector<1x32xf32>
    %241 = arith.addf %240, %239 : vector<1x32xf32>
    %242 = arith.divf %240, %241 : vector<1x32xf32>
    %243 = vector.extract_strided_slice %224 {offsets = [0, 64], sizes = [1, 32], strides = [1, 1]} : vector<1x96xf32> to vector<1x32xf32>
    %244 = vector.extract_strided_slice %226 {offsets = [0, 64], sizes = [1, 32], strides = [1, 1]} : vector<1x96xf32> to vector<1x32xf32>
    %245 = arith.mulf %234, %244 : vector<1x32xf32>
    %246 = arith.addf %243, %245 : vector<1x32xf32>
    %247 = math.tanh %246 : vector<1x32xf32>
    %cst_58 = arith.constant 1.000000e+00 : f32
    %248 = vector.broadcast %cst_58 : f32 to vector<1x32xf32>
    %249 = arith.subf %248, %242 : vector<1x32xf32>
    %250 = arith.mulf %249, %247 : vector<1x32xf32>
    %251 = arith.mulf %242, %221 : vector<1x32xf32>
    %252 = arith.addf %250, %251 : vector<1x32xf32>
    %c8_i32_59 = arith.constant 8 : i32
    %253 = arith.muli %arg0, %c8_i32_59 : i32
    %c6_i32 = arith.constant 6 : i32
    %254 = arith.addi %253, %c6_i32 : i32
    %c20_i32_60 = arith.constant 20 : i32
    %255 = arith.cmpi slt, %254, %c20_i32_60 : i32
    %256 = arith.select %255, %252, %221 : vector<1x32xf32>
    %257 = arith.truncf %256 : vector<1x32xf32> to vector<1x32xbf16>
    %c6 = arith.constant 6 : index
    %c0_61 = arith.constant 0 : index
    %258 = vector.load %arg7[%c6, %c0_61] : memref<8x32xbf16, #tpu.memory_space<vmem>>, vector<1x32xbf16>
    tpu.vector_store %arg7[%c6, %c0_61], %257 {strides = array<i32>} : memref<8x32xbf16, #tpu.memory_space<vmem>>, vector<1x32xbf16>,
    %259 = vector.extract_strided_slice %10 {offsets = [7, 0], sizes = [1, 96], strides = [1, 1]} : vector<8x96xf32> to vector<1x96xf32>
    %cst_62 = arith.constant dense<0.000000e+00> : vector<1x96xf32>
    %260 = tpu.matmul %256, %11, %cst_62 {dimension_numbers = #tpu.dot_dimension_numbers<[1], [0], [0], [1], [0, 0, 1, 1], [], []>} : vector<1x32xf32>, vector<32x96xf32>, vector<1x96xf32> -> vector<1x96xf32>
    %261 = arith.addf %260, %12 : vector<1x96xf32>
    %262 = vector.extract_strided_slice %259 {offsets = [0, 0], sizes = [1, 32], strides = [1, 1]} : vector<1x96xf32> to vector<1x32xf32>
    %263 = vector.extract_strided_slice %261 {offsets = [0, 0], sizes = [1, 32], strides = [1, 1]} : vector<1x96xf32> to vector<1x32xf32>
    %264 = arith.addf %262, %263 : vector<1x32xf32>
    %265 = arith.negf %264 : vector<1x32xf32>
    %266 = math.exp %265 : vector<1x32xf32>
    %cst_63 = arith.constant 1.000000e+00 : f32
    %267 = vector.broadcast %cst_63 : f32 to vector<1x32xf32>
    %268 = arith.addf %267, %266 : vector<1x32xf32>
    %269 = arith.divf %267, %268 : vector<1x32xf32>
    %270 = vector.extract_strided_slice %259 {offsets = [0, 32], sizes = [1, 32], strides = [1, 1]} : vector<1x96xf32> to vector<1x32xf32>
    %271 = vector.extract_strided_slice %261 {offsets = [0, 32], sizes = [1, 32], strides = [1, 1]} : vector<1x96xf32> to vector<1x32xf32>
    %272 = arith.addf %270, %271 : vector<1x32xf32>
    %273 = arith.negf %272 : vector<1x32xf32>
    %274 = math.exp %273 : vector<1x32xf32>
    %cst_64 = arith.constant 1.000000e+00 : f32
    %275 = vector.broadcast %cst_64 : f32 to vector<1x32xf32>
    %276 = arith.addf %275, %274 : vector<1x32xf32>
    %277 = arith.divf %275, %276 : vector<1x32xf32>
    %278 = vector.extract_strided_slice %259 {offsets = [0, 64], sizes = [1, 32], strides = [1, 1]} : vector<1x96xf32> to vector<1x32xf32>
    %279 = vector.extract_strided_slice %261 {offsets = [0, 64], sizes = [1, 32], strides = [1, 1]} : vector<1x96xf32> to vector<1x32xf32>
    %280 = arith.mulf %269, %279 : vector<1x32xf32>
    %281 = arith.addf %278, %280 : vector<1x32xf32>
    %282 = math.tanh %281 : vector<1x32xf32>
    %cst_65 = arith.constant 1.000000e+00 : f32
    %283 = vector.broadcast %cst_65 : f32 to vector<1x32xf32>
    %284 = arith.subf %283, %277 : vector<1x32xf32>
    %285 = arith.mulf %284, %282 : vector<1x32xf32>
    %286 = arith.mulf %277, %256 : vector<1x32xf32>
    %287 = arith.addf %285, %286 : vector<1x32xf32>
    %c8_i32_66 = arith.constant 8 : i32
    %288 = arith.muli %arg0, %c8_i32_66 : i32
    %c7_i32 = arith.constant 7 : i32
    %289 = arith.addi %288, %c7_i32 : i32
    %c20_i32_67 = arith.constant 20 : i32
    %290 = arith.cmpi slt, %289, %c20_i32_67 : i32
    %291 = arith.select %290, %287, %256 : vector<1x32xf32>
    %292 = arith.truncf %291 : vector<1x32xf32> to vector<1x32xbf16>
    %c7 = arith.constant 7 : index
    %c0_68 = arith.constant 0 : index
    %293 = vector.load %arg7[%c7, %c0_68] : memref<8x32xbf16, #tpu.memory_space<vmem>>, vector<1x32xbf16>
    tpu.vector_store %arg7[%c7, %c0_68], %292 {strides = array<i32>} : memref<8x32xbf16, #tpu.memory_space<vmem>>, vector<1x32xbf16>,
    %c0_69 = arith.constant 0 : index
    %c0_70 = arith.constant 0 : index
    %294 = vector.load %arg8[%c0_69, %c0_70] : memref<1x32xf32, #tpu.memory_space<vmem>>, vector<1x32xf32>
    tpu.vector_store %arg8[%c0_69, %c0_70], %291 {strides = array<i32>} : memref<1x32xf32, #tpu.memory_space<vmem>>, vector<1x32xf32>,
    return
  }
  func.func @transform_0(%arg0: i32) -> (i32, i32) {
    %c0_i32 = arith.constant 0 : i32
    %c0_i32_0 = arith.constant 0 : i32
    return %arg0, %c0_i32 : i32, i32
  }
  func.func @transform_1(%arg0: i32) -> (i32, i32) {
    %c0_i32 = arith.constant 0 : i32
    %c0_i32_0 = arith.constant 0 : i32
    %c0_i32_1 = arith.constant 0 : i32
    return %c0_i32, %c0_i32_0 : i32, i32
  }
  func.func @transform_2(%arg0: i32) -> (i32, i32) {
    %c0_i32 = arith.constant 0 : i32
    %c0_i32_0 = arith.constant 0 : i32
    %c0_i32_1 = arith.constant 0 : i32
    return %c0_i32, %c0_i32_0 : i32, i32
  }
  func.func @transform_3(%arg0: i32) -> (i32, i32) {
    %c0_i32 = arith.constant 0 : i32
    %c0_i32_0 = arith.constant 0 : i32
    %c0_i32_1 = arith.constant 0 : i32
    return %c0_i32, %c0_i32_0 : i32, i32
  }
  func.func @transform_4(%arg0: i32) -> (i32, i32) {
    %c0_i32 = arith.constant 0 : i32
    %c0_i32_0 = arith.constant 0 : i32
    %c0_i32_1 = arith.constant 0 : i32
    return %c0_i32, %c0_i32_0 : i32, i32
  }
  func.func @transform_5(%arg0: i32) -> (i32, i32) {
    %c0_i32 = arith.constant 0 : i32
    %c0_i32_0 = arith.constant 0 : i32
    %c0_i32_1 = arith.constant 0 : i32
    return %c0_i32, %c0_i32_0 : i32, i32
  }
  func.func @transform_6(%arg0: i32) -> (i32, i32) {
    %c0_i32 = arith.constant 0 : i32
    %c0_i32_0 = arith.constant 0 : i32
    return %arg0, %c0_i32 : i32, i32
  }
  func.func @transform_7(%arg0: i32) -> (i32, i32) {
    %c0_i32 = arith.constant 0 : i32
    %c0_i32_0 = arith.constant 0 : i32
    %c0_i32_1 = arith.constant 0 : i32
    return %c0_i32, %c0_i32_0 : i32, i32
  }
}

</mosaic_0001>

<llo_original>
// kernel: tpu_custom_call.1
$region0: #{tpu_custom_call.1}
  #allocation0 [shape = 'u32[]', space=smem, size = 0x4, offset = 0x4, fixed_abs, tag = 'smem constant byte address 0x4 - core index']
  #allocation1 [shape = 'u32[72,128]{1,0:T(1,128)}', space=vmem, size = 0x9000, scoped, tag = 'internal scratch']
  %s0 = inlined_call_operand.hbm [shape: f32[24,32], index: 0, kind: input, shape index: {}]
  %s1 = inlined_call_operand.hbm [shape: f32[1,32], index: 1, kind: input, shape index: {}]
  %s2 = inlined_call_operand.hbm [shape: f32[32,96], index: 2, kind: input, shape index: {}]
  %s3 = inlined_call_operand.hbm [shape: f32[32,96], index: 3, kind: input, shape index: {}]
  %s4 = inlined_call_operand.vmem [shape: f32[1,96], index: 4, kind: input, shape index: {}]
  %s5 = inlined_call_operand.vmem [shape: f32[1,96], index: 5, kind: input, shape index: {}]
  %s6 = inlined_call_operand.hbm [shape: bf16[24,32], index: 6, kind: output, shape index: {0}]
  %s7 = inlined_call_operand.hbm [shape: f32[1,32], index: 7, kind: output, shape index: {1}]
  %8 = xla_tuple %s6, %s7
  %s9 = sld [smem:[#allocation0]]
  $region85: #{tpu_custom_call.1} parent=0
    _
  %s11 = ssub.s32 1, %s9
  %s12 = scalar_select 0, %s11, %s9
  $region1: #{tpu_custom_call.1} parent=0
    #allocation2 [shape = 'u8[8192]{0}', space=vmem, size = 0x2000, scoped, tag = 'input window, operand 0']
    #allocation3 [shape = 's32[2]{0}', space=sflag, size = 0x8, scoped, tag = 'scoped memory for tpu_custom_call.1']
    #allocation4 [shape = 's32[2]{0}', space=sflag, size = 0x8, scoped, tag = 'scoped memory for tpu_custom_call.1']
    #allocation5 [shape = 'u8[512]{0}', space=vmem, size = 0x400, scoped, tag = 'input window, operand 1, single buffered']
    #allocation6 [shape = 's32[1]{0}', space=sflag, size = 0x4, scoped, tag = 'scoped memory for tpu_custom_call.1']
    #allocation7 [shape = 'u8[16384]{0}', space=vmem, size = 0x4000, scoped, tag = 'input window, operand 2, single buffered']
    #allocation8 [shape = 'u8[16384]{0}', space=vmem, size = 0x4000, scoped, tag = 'input window, operand 3, single buffered']
    #allocation9 [shape = 's32[1]{0}', space=sflag, size = 0x4, scoped, tag = 'scoped memory for tpu_custom_call.1']
    #allocation10 [shape = 'u8[4096]{0}', space=vmem, size = 0x1000, scoped, tag = 'output window, operand 0']
    #allocation11 [shape = 'u8[512]{0}', space=vmem, size = 0x400, scoped, tag = 'output window, operand 1, single buffered']
    #allocation12 [shape = 's32[1]{0}', space=sflag, size = 0x4, scoped, tag = 'scoped memory for tpu_custom_call.1']
    %13 = vsyncpa [#allocation3], 0
    %s14 = scalar_lea.sflag [#allocation3], 1
    %15 = vsyncpa %s14, 0
    %16 = vsyncpa [#allocation6], 0
    %17 = vsyncpa [#allocation9], 0
    %18 = vsyncpa [#allocation4], 0
    %s19 = scalar_lea.sflag [#allocation4], 1
    %20 = vsyncpa %s19, 0
    %21 = vsyncpa [#allocation12], 0
    loop: start=0, step=1, limit=5
    $region2: #{tpu_custom_call.1} parent=1 // loop_pre_header
      _
    $region3: #{tpu_custom_call.1} parent=1 // loop_header
      %s23 = sphi 0, %s27
      %p24 = scmp.ge.s32.totalorder %s23, 5
      %s33 = sphi 0, %s35
      %s36 = sphi 0, %s33
      %s37 = sphi 0, %s36
      %s53 = sphi 0, %s37
      %s57 = sphi 0, %s57
      %s59 = sphi 0, %s57
      %s60 = sphi 0, %s59
      %s74 = sphi 0, %s60
      %s78 = sphi 0, %s78
      %s80 = sphi 0, %s78
      %s81 = sphi 0, %s80
      %s95 = sphi 0, %s81
      %s99 = sphi 0, %s99
      %s101 = sphi 0, %s99
      %s102 = sphi 0, %s101
      %s116 = sphi 0, %s102
      %s120 = sphi 0, %s120
      %s122 = sphi 0, %s120
      %s123 = sphi 0, %s122
      %s137 = sphi 0, %s123
      %s141 = sphi 0, %s141
      %s143 = sphi 0, %s141
      %s144 = sphi 0, %s143
      %s158 = sphi 0, %s144
      %s164 = sphi 0, %s166
      %s167 = sphi 0, %s164
      %s168 = sphi 0, %s167
      %s184 = sphi 0, %s168
      %s188 = sphi 0, %s188
      %s190 = sphi 0, %s188
      %s191 = sphi 0, %s190
      %s205 = sphi 0, %s191
    $region4: #{tpu_custom_call.1} parent=1 // loop_header_branch
      %26 = sbr.rel (%p24) target = $region8
    $region5: #{tpu_custom_call.1} parent=1 // loop_body
      %s28 = ssub.s32 %s23, 1
      %s29 = ssub.s32 %s23, 2
      %s30 = sadd.s32 %s23, 1
      %s31 = ssub.s32 %s23, %s30
      %p32 = scmp.eq.s32.totalorder %s31, 0
      %s34 = sadd.s32 %s33, 1
      %s35 = scalar_select %p32, %s33, %s34
      %p38 = pneg %p32
      %p39 = scmp.eq.s32.totalorder %s23, 2
      %p40 = por %p38, %p39
      %p41 = scmp.ne.s32.totalorder %s33, %s36
      %p42 = scmp.eq.s32.totalorder %s23, 0
      %p43 = por %p41, %p42
      %p44 = scmp.ne.s32.totalorder %s33, %s36
      %p45 = scmp.eq.s32.totalorder %s28, 2
      %p46 = por %p44, %p45
      %p47 = scmp.ne.s32.totalorder %s36, %s37
      %p48 = scmp.eq.s32.totalorder %s28, 0
      %p49 = por %p47, %p48
      %p50 = scmp.ne.s32.totalorder %s36, %s37
      %p51 = scmp.eq.s32.totalorder %s29, 2
      %p52 = por %p50, %p51
      %p54 = scmp.ne.s32.totalorder %s37, %s53
      %p55 = scmp.eq.s32.totalorder %s29, 0
      %p56 = por %p54, %p55
      %s58 = sadd.s32 %s57, 1
      %p61 = scmp.eq.s32.totalorder %s23, 2
      %p62 = scmp.ne.s32.totalorder %s57, %s59
      %p63 = scmp.eq.s32.totalorder %s23, 0
      %p64 = por %p62, %p63
      %p65 = scmp.ne.s32.totalorder %s57, %s59
      %p66 = scmp.eq.s32.totalorder %s28, 2
      %p67 = por %p65, %p66
      %p68 = scmp.ne.s32.totalorder %s59, %s60
      %p69 = scmp.eq.s32.totalorder %s28, 0
      %p70 = por %p68, %p69
      %p71 = scmp.ne.s32.totalorder %s59, %s60
      %p72 = scmp.eq.s32.totalorder %s29, 2
      %p73 = por %p71, %p72
      %p75 = scmp.ne.s32.totalorder %s60, %s74
      %p76 = scmp.eq.s32.totalorder %s29, 0
      %p77 = por %p75, %p76
      %s79 = sadd.s32 %s78, 1
      %p82 = scmp.eq.s32.totalorder %s23, 2
      %p83 = scmp.ne.s32.totalorder %s78, %s80
      %p84 = scmp.eq.s32.totalorder %s23, 0
      %p85 = por %p83, %p84
      %p86 = scmp.ne.s32.totalorder %s78, %s80
      %p87 = scmp.eq.s32.totalorder %s28, 2
      %p88 = por %p86, %p87
      %p89 = scmp.ne.s32.totalorder %s80, %s81
      %p90 = scmp.eq.s32.totalorder %s28, 0
      %p91 = por %p89, %p90
      %p92 = scmp.ne.s32.totalorder %s80, %s81
      %p93 = scmp.eq.s32.totalorder %s29, 2
      %p94 = por %p92, %p93
      %p96 = scmp.ne.s32.totalorder %s81, %s95
      %p97 = scmp.eq.s32.totalorder %s29, 0
      %p98 = por %p96, %p97
      %s100 = sadd.s32 %s99, 1
      %p103 = scmp.eq.s32.totalorder %s23, 2
      %p104 = scmp.ne.s32.totalorder %s99, %s101
      %p105 = scmp.eq.s32.totalorder %s23, 0
      %p106 = por %p104, %p105
      %p107 = scmp.ne.s32.totalorder %s99, %s101
      %p108 = scmp.eq.s32.totalorder %s28, 2
      %p109 = por %p107, %p108
      %p110 = scmp.ne.s32.totalorder %s101, %s102
      %p111 = scmp.eq.s32.totalorder %s28, 0
      %p112 = por %p110, %p111
      %p113 = scmp.ne.s32.totalorder %s101, %s102
      %p114 = scmp.eq.s32.totalorder %s29, 2
      %p115 = por %p113, %p114
      %p117 = scmp.ne.s32.totalorder %s102, %s116
      %p118 = scmp.eq.s32.totalorder %s29, 0
      %p119 = por %p117, %p118
      %s121 = sadd.s32 %s120, 1
      %p124 = scmp.eq.s32.totalorder %s23, 2
      %p125 = scmp.ne.s32.totalorder %s120, %s122
      %p126 = scmp.eq.s32.totalorder %s23, 0
      %p127 = por %p125, %p126
      %p128 = scmp.ne.s32.totalorder %s120, %s122
      %p129 = scmp.eq.s32.totalorder %s28, 2
      %p130 = por %p128, %p129
      %p131 = scmp.ne.s32.totalorder %s122, %s123
      %p132 = scmp.eq.s32.totalorder %s28, 0
      %p133 = por %p131, %p132
      %p134 = scmp.ne.s32.totalorder %s122, %s123
      %p135 = scmp.eq.s32.totalorder %s29, 2
      %p136 = por %p134, %p135
      %p138 = scmp.ne.s32.totalorder %s123, %s137
      %p139 = scmp.eq.s32.totalorder %s29, 0
      %p140 = por %p138, %p139
      %s142 = sadd.s32 %s141, 1
      %p145 = scmp.eq.s32.totalorder %s23, 2
      %p146 = scmp.ne.s32.totalorder %s141, %s143
      %p147 = scmp.eq.s32.totalorder %s23, 0
      %p148 = por %p146, %p147
      %p149 = scmp.ne.s32.totalorder %s141, %s143
      %p150 = scmp.eq.s32.totalorder %s28, 2
      %p151 = por %p149, %p150
      %p152 = scmp.ne.s32.totalorder %s143, %s144
      %p153 = scmp.eq.s32.totalorder %s28, 0
      %p154 = por %p152, %p153
      %p155 = scmp.ne.s32.totalorder %s143, %s144
      %p156 = scmp.eq.s32.totalorder %s29, 2
      %p157 = por %p155, %p156
      %p159 = scmp.ne.s32.totalorder %s144, %s158
      %p160 = scmp.eq.s32.totalorder %s29, 0
      %p161 = por %p159, %p160
      %s162 = ssub.s32 %s23, %s30
      %p163 = scmp.eq.s32.totalorder %s162, 0
      %s165 = sadd.s32 %s164, 1
      %s166 = scalar_select %p163, %s164, %s165
      %p169 = pneg %p163
      %p170 = scmp.eq.s32.totalorder %s23, 2
      %p171 = por %p169, %p170
      %p172 = scmp.ne.s32.totalorder %s164, %s167
      %p173 = scmp.eq.s32.totalorder %s23, 0
      %p174 = por %p172, %p173
      %p175 = scmp.ne.s32.totalorder %s164, %s167
      %p176 = scmp.eq.s32.totalorder %s28, 2
      %p177 = por %p175, %p176
      %p178 = scmp.ne.s32.totalorder %s167, %s168
      %p179 = scmp.eq.s32.totalorder %s28, 0
      %p180 = por %p178, %p179
      %p181 = scmp.ne.s32.totalorder %s167, %s168
      %p182 = scmp.eq.s32.totalorder %s29, 2
      %p183 = por %p181, %p182
      %p185 = scmp.ne.s32.totalorder %s168, %s184
      %p186 = scmp.eq.s32.totalorder %s29, 0
      %p187 = por %p185, %p186
      %s189 = sadd.s32 %s188, 1
      %p192 = scmp.eq.s32.totalorder %s23, 2
      %p193 = scmp.ne.s32.totalorder %s188, %s190
      %p194 = scmp.eq.s32.totalorder %s23, 0
      %p195 = por %p193, %p194
      %p196 = scmp.ne.s32.totalorder %s188, %s190
      %p197 = scmp.eq.s32.totalorder %s28, 2
      %p198 = por %p196, %p197
      %p199 = scmp.ne.s32.totalorder %s190, %s191
      %p200 = scmp.eq.s32.totalorder %s28, 0
      %p201 = por %p199, %p200
      %p202 = scmp.ne.s32.totalorder %s190, %s191
      %p203 = scmp.eq.s32.totalorder %s29, 2
      %p204 = por %p202, %p203
      %p206 = scmp.ne.s32.totalorder %s191, %s205
      %p207 = scmp.eq.s32.totalorder %s29, 0
      %p208 = por %p206, %p207
      %p209 = scmp.le.s32.totalorder 1, %s23
      %p210 = scmp.lt.s32.totalorder %s23, 4
      %p211 = pnand %p209, %p210
      %p212 = pneg %p211
      // Predicated region
      $region9: #{tpu_custom_call.1} parent=5 // pred_check
        _
      $region10: #{tpu_custom_call.1} parent=5 // pred_check_branch
        %214 = sbr.rel (%p211) target = $region12
      $region11: #{tpu_custom_call.1} parent=5 // pred_region
        %s215 = ssub.s32 %s23, 1
        // Predicated region
        $region13: #{tpu_custom_call.1} parent=11 // pred_check
          %p216 = pneg %p70
        $region14: #{tpu_custom_call.1} parent=11 // pred_check_branch
          %218 = sbr.rel (%p216) target = $region16
        $region15: #{tpu_custom_call.1} parent=11 // pred_region
          %220 = vsyncadd [#allocation6], 0
          %s222 = sshll.u32 %s1, 4
          %s223 = int_to_ptr.hbm [resolvable:$true] %s222
          %s224 = sshll.u32 [#allocation5], 4
          %s225 = int_to_ptr.vmem [resolvable:$true] %s224
          %227 = dma.hbm_to_vmem [thread:$0]  %s223, 16, %s225, [#allocation6]
        $region16: #{tpu_custom_call.1} parent=11 // pred_fallthru
          _
        // Predicated region
        $region17: #{tpu_custom_call.1} parent=11 // pred_check
          %p228 = pneg %p91
        $region18: #{tpu_custom_call.1} parent=11 // pred_check_branch
          %230 = sbr.rel (%p228) target = $region20
        $region19: #{tpu_custom_call.1} parent=11 // pred_region
          %232 = vsyncadd [#allocation6], 0
          %s233 = sshll.u32 %s2, 4
          %s234 = int_to_ptr.hbm [resolvable:$true] %s233
          %s235 = sshll.u32 [#allocation7], 4
          %s236 = int_to_ptr.vmem [resolvable:$true] %s235
          %241 = dma.hbm_to_vmem [thread:$0]  %s234, 512, %s236, [#allocation6], 128, 128, 8
        $region20: #{tpu_custom_call.1} parent=11 // pred_fallthru
          _
        // Predicated region
        $region21: #{tpu_custom_call.1} parent=11 // pred_check
          %p242 = pneg %p112
        $region22: #{tpu_custom_call.1} parent=11 // pred_check_branch
          %244 = sbr.rel (%p242) target = $region24
        $region23: #{tpu_custom_call.1} parent=11 // pred_region
          %246 = vsyncadd [#allocation9], 0
          %s247 = sshll.u32 %s3, 4
          %s248 = int_to_ptr.hbm [resolvable:$true] %s247
          %s249 = sshll.u32 [#allocation8], 4
          %s250 = int_to_ptr.vmem [resolvable:$true] %s249
          %255 = dma.hbm_to_vmem [thread:$0]  %s248, 512, %s250, [#allocation9], 128, 128, 8
        $region24: #{tpu_custom_call.1} parent=11 // pred_fallthru
          _
        // Predicated region
        $region25: #{tpu_custom_call.1} parent=11 // pred_check
          %p256 = pneg %p133
        $region26: #{tpu_custom_call.1} parent=11 // pred_check_branch
          %258 = sbr.rel (%p256) target = $region28
        $region27: #{tpu_custom_call.1} parent=11 // pred_region
          _
        $region28: #{tpu_custom_call.1} parent=11 // pred_fallthru
          _
        // Predicated region
        $region29: #{tpu_custom_call.1} parent=11 // pred_check
          %p259 = pneg %p154
        $region30: #{tpu_custom_call.1} parent=11 // pred_check_branch
          %261 = sbr.rel (%p259) target = $region32
        $region31: #{tpu_custom_call.1} parent=11 // pred_region
          _
        $region32: #{tpu_custom_call.1} parent=11 // pred_fallthru
          _
      $region12: #{tpu_custom_call.1} parent=5 // pred_fallthru
        _
      %p262 = scmp.lt.s32.totalorder %s23, 3
      // Predicated region
      $region33: #{tpu_custom_call.1} parent=5 // pred_check
        %p263 = pneg %p262
      $region34: #{tpu_custom_call.1} parent=5 // pred_check_branch
        %265 = sbr.rel (%p263) target = $region36
      $region35: #{tpu_custom_call.1} parent=5 // pred_region
        // Predicated region
        $region37: #{tpu_custom_call.1} parent=35 // pred_check
          %p266 = pneg %p43
        $region38: #{tpu_custom_call.1} parent=35 // pred_check_branch
          %268 = sbr.rel (%p266) target = $region40
        $region39: #{tpu_custom_call.1} parent=35 // pred_region
          %s269 = sand.u32 %s33, 1
          %s270 = scalar_lea.sflag [#allocation3], %s269
          %s271 = sand.u32 %s33, 1
          %s272 = smul.addr %s271, 8
          %s273 = scalar_lea.vmem [#allocation2], %s272
          %275 = vsyncadd %s270, 0
          %s276 = smul.addr %s23, 8
          %s277 = scalar_lea.hbm %s0, %s276
          %s279 = sshll.u32 %s277, 4
          %s280 = int_to_ptr.hbm [resolvable:$true] %s279
          %s281 = sshll.u32 %s273, 4
          %s282 = int_to_ptr.vmem [resolvable:$true] %s281
          %284 = dma.hbm_to_vmem [thread:$0]  %s280, 128, %s282, %s270
        $region40: #{tpu_custom_call.1} parent=35 // pred_fallthru
          _
      $region36: #{tpu_custom_call.1} parent=5 // pred_fallthru
        _
      %p285 = scmp.le.s32.totalorder 1, %s23
      %p286 = scmp.lt.s32.totalorder %s23, 4
      %p287 = pnand %p285, %p286
      %p288 = pneg %p287
      // Predicated region
      $region41: #{tpu_custom_call.1} parent=5 // pred_check
        _
      $region42: #{tpu_custom_call.1} parent=5 // pred_check_branch
        %290 = sbr.rel (%p287) target = $region44
      $region43: #{tpu_custom_call.1} parent=5 // pred_region
        %s291 = ssub.s32 %s23, 1
        %s292 = sand.u32 %s36, 1
        %s293 = scalar_lea.sflag [#allocation3], %s292
        %s294 = sand.u32 %s36, 1
        %s295 = smul.addr %s294, 8
        %s296 = scalar_lea.vmem [#allocation2], %s295
        // Predicated region
        $region45: #{tpu_custom_call.1} parent=43 // pred_check
          %p297 = pneg %p49
        $region46: #{tpu_custom_call.1} parent=43 // pred_check_branch
          %299 = sbr.rel (%p297) target = $region48
        $region47: #{tpu_custom_call.1} parent=43 // pred_region
          %301 = dma.done %s293, 128
        $region48: #{tpu_custom_call.1} parent=43 // pred_fallthru
          _
        // Predicated region
        $region49: #{tpu_custom_call.1} parent=43 // pred_check
          %p302 = pneg %p70
        $region50: #{tpu_custom_call.1} parent=43 // pred_check_branch
          %304 = sbr.rel (%p302) target = $region52
        $region51: #{tpu_custom_call.1} parent=43 // pred_region
          %306 = dma.done [#allocation6], 16
        $region52: #{tpu_custom_call.1} parent=43 // pred_fallthru
          _
        // Predicated region
        $region53: #{tpu_custom_call.1} parent=43 // pred_check
          %p307 = pneg %p91
        $region54: #{tpu_custom_call.1} parent=43 // pred_check_branch
          %309 = sbr.rel (%p307) target = $region56
        $region55: #{tpu_custom_call.1} parent=43 // pred_region
          %311 = dma.done [#allocation6], 512
        $region56: #{tpu_custom_call.1} parent=43 // pred_fallthru
          _
        // Predicated region
        $region57: #{tpu_custom_call.1} parent=43 // pred_check
          %p312 = pneg %p112
        $region58: #{tpu_custom_call.1} parent=43 // pred_check_branch
          %314 = sbr.rel (%p312) target = $region60
        $region59: #{tpu_custom_call.1} parent=43 // pred_region
          %316 = dma.done [#allocation9], 512
        $region60: #{tpu_custom_call.1} parent=43 // pred_fallthru
          _
        %s317 = sand.u32 %s36, 1
        %s318 = scalar_lea.sflag [#allocation3], %s317
        %s319 = sand.u32 %s36, 1
        %s320 = smul.addr %s319, 8
        %s321 = scalar_lea.vmem [#allocation2], %s320
        %p322 = pneg %p49
        %p323 = pneg %p46
        %p324 = pneg %p70
        %p325 = pneg %p67
        %p326 = pneg %p91
        %p327 = pneg %p88
        %p328 = pneg %p112
        %p329 = pneg %p109
        %p330 = pneg %p133
        %p331 = pneg %p130
        %p332 = pneg %p154
        %p333 = pneg %p151
        %p334 = pneg %p180
        %p335 = pneg %p177
        %s336 = sand.u32 %s167, 1
        %s337 = scalar_lea.sflag [#allocation4], %s336
        %s338 = sand.u32 %s167, 1
        %s339 = smul.addr %s338, 4
        %s340 = scalar_lea.vmem [#allocation10], %s339
        %p341 = pneg %p201
        %p342 = pneg %p198
        %p343 = scmp.eq.s32.totalorder %s28, 0
        // Predicated region
        $region61: #{tpu_custom_call.1} parent=43 // pred_check
          %p344 = pneg %p343
        $region62: #{tpu_custom_call.1} parent=43 // pred_check_branch
          %346 = sbr.rel (%p344) target = $region64
        $region63: #{tpu_custom_call.1} parent=43 // pred_region
          %v347 = vld [vmem:[#allocation5] sm:$0x1]
          %vm348 = vcmask 253952
          %349 = vst.msk [vmem:[#allocation11] sm:$0x1] %vm348, %v347
        $region64: #{tpu_custom_call.1} parent=43 // pred_fallthru
          _
        %v350 = vld [vmem:[%s296] sm:$0xff]
        %v351 = vmax.f32 %v350, 0.0
        %v352 = vld [vmem:[#allocation7] sm:$0xff]
        %v353 = vld [vmem:[#allocation7 + $0x8] sm:$0xff]
        %v354 = vld [vmem:[#allocation7 + $0x10] sm:$0xff]
        %v355 = vld [vmem:[#allocation7 + $0x18] sm:$0xff]
        %v356 = vld [vmem:[%s4] sm:$0x1]
        %v358 = vperm.slane %v356, 0
        %vm360 = vcmask 261120
        %v362 = vsel %vm360, %v351, 0
        %364 = vmatpush.msra.mxu0 0.0
        %365 = vmatpush.msra.mxu0 0.0
        %366 = vmatpush.msra.mxu0 0.0
        %367 = vmatpush.msra.mxu0 0.0
        %368 = vmatpush.msra.mxu0 0.0
        %369 = vmatpush.msra.mxu0 0.0
        %370 = vmatpush.msra.mxu0 0.0
        %371 = vmatpush.msra.mxu0 0.0
        %372 = vmatpush.msra.mxu0 0.0
        %373 = vmatpush.msra.mxu0 0.0
        %374 = vmatpush.msra.mxu0 0.0
        %375 = vmatpush.msra.mxu0 0.0
        %376 = vmatpush.msra.mxu0 %v355
        %377 = vmatpush.msra.mxu0 %v354
        %378 = vmatpush.msra.mxu0 %v353
        %379 = vmatpush.msra.mxu0 %v352
        %380 = vmatmul.f32.gmra.mxu0 %v362
        %v381 = vpop.f32.mrf.mxu0
        %v382 = vadd.f32 %v358, %v381
        %383 = vdwg.mxu0
        %v384 = vld [vmem:[#allocation8] sm:$0xff]
        %v385 = vld [vmem:[#allocation8 + $0x8] sm:$0xff]
        %v386 = vld [vmem:[#allocation8 + $0x10] sm:$0xff]
        %v387 = vld [vmem:[#allocation8 + $0x18] sm:$0xff]
        %v388 = vld [vmem:[%s5] sm:$0x1]
        %v389 = vld [vmem:[#allocation11] sm:$0x1]
        %v391 = vsel %vm360, %v389, 0
        %393 = vmatpush.msra.mxu0 0.0
        %394 = vmatpush.msra.mxu0 0.0
        %395 = vmatpush.msra.mxu0 0.0
        %396 = vmatpush.msra.mxu0 0.0
        %397 = vmatpush.msra.mxu0 0.0
        %398 = vmatpush.msra.mxu0 0.0
        %399 = vmatpush.msra.mxu0 0.0
        %400 = vmatpush.msra.mxu0 0.0
        %401 = vmatpush.msra.mxu0 0.0
        %402 = vmatpush.msra.mxu0 0.0
        %403 = vmatpush.msra.mxu0 0.0
        %404 = vmatpush.msra.mxu0 0.0
        %405 = vmatpush.msra.mxu0 %v387
        %406 = vmatpush.msra.mxu0 %v386
        %407 = vmatpush.msra.mxu0 %v385
        %408 = vmatpush.msra.mxu0 %v384
        %409 = vmatmul.f32.gmra.mxu0 %v391
        %v410 = vpop.f32.mrf.mxu0
        %v411 = vadd.f32 %v388, %v410
        %412 = vdwg.mxu0
        %v413 = vadd.f32 %v382, %v411
        %v414 = vxor.u32 %v413, 2147483648
        %v415 = vmul.f32 %v414, 1.442695
        %v416 = vpow.pop %v415
        %v417 = vadd.f32 %v416, 1.0
        %v418 = vrcp.pop %v417
        %v419 = vmul.f32 %v417, %v418
        %v420 = vsub.f32 1.0, %v419
        %v421 = vmul.f32 %v418, %v420
        %v422 = vadd.f32 %v418, %v421
        %vm423 = vweird.f32 %v417
        %vm424 = vweird.f32 %v418
        %vm425 = vmor %vm423, %vm424
        %v426 = vsel %vm425, %v418, %v422
        %v427 = vand.u32 2147483647, %v417
        %vm428 = vcmp.eq.f32.partialorder %v427, 8.507059e+37
        %v429 = vand.u32 %v417, 2147483648
        %v430 = vor.u32 1.1754944e-38, %v429
        %v431 = vsel %vm428, %v430, %v426
        %v432 = vmul.f32 1.0, %v431
        %434 = vrot.lane.b32.xlu0 %v411, 64
        %v435 = vpop.permute.xlu0 %434
        %v437 = vmul.f32 %v432, %v435
        %439 = vrot.lane.b32.xlu0 %v437, 64
        %v440 = vpop.permute.xlu0 %439
        %v442 = vadd.f32 %v382, %v440
        %v443 = vtanh.pop %v442
        %v444 = vsub.f32 1.0, %v432
        %446 = vrot.lane.b32.xlu0 %v443, 96
        %v447 = vpop.permute.xlu0 %446
        %v449 = vmul.f32 %v444, %v447
        %v450 = vperm.slane %v389, 0
        %451 = vrot.lane.b32.xlu0 %v450, 32
        %v452 = vpop.permute.xlu0 %451
        %v454 = vmul.f32 %v432, %v452
        %v455 = vadd.f32 %v449, %v454
        %s456 = smul.u32 %s28, 8
        %p457 = scmp.lt.s32.totalorder %s456, 20
        %s458 = scalar_select %p457, 1, 0
        %v459 = vstv %s458
        %vm460 = vcmp.eq.s32.totalorder %v459, 1
        %v461 = vsel %vm460, %v455, %v452
        %v462 = vpack.c.bf16 %v461, %v461
        %464 = vrot.lane.b32.xlu0 %v462, 96
        %v465 = vpop.permute.xlu0 %464
        %vm467 = vcmask 253952
        %vm468 = vsmask.f32 256
        %vm469 = vmand %vm467, %vm468
        %v470 = vld [vmem:[%s340] sm:$0x1]
        %v471 = vsel %vm469, %v465, %v470
        %472 = vst [vmem:[%s340] sm:$0x1] %v471
        %474 = vrot.lane.b32.xlu0 %v461, 96
        %v475 = vpop.permute.xlu0 %474
        %v476 = vsel %vm360, %v475, 0
        %478 = vmatpush.msra.mxu0 0.0
        %479 = vmatpush.msra.mxu0 0.0
        %480 = vmatpush.msra.mxu0 0.0
        %481 = vmatpush.msra.mxu0 0.0
        %482 = vmatpush.msra.mxu0 0.0
        %483 = vmatpush.msra.mxu0 0.0
        %484 = vmatpush.msra.mxu0 0.0
        %485 = vmatpush.msra.mxu0 0.0
        %486 = vmatpush.msra.mxu0 0.0
        %487 = vmatpush.msra.mxu0 0.0
        %488 = vmatpush.msra.mxu0 0.0
        %489 = vmatpush.msra.mxu0 0.0
        %490 = vmatpush.msra.mxu0 %v387
        %491 = vmatpush.msra.mxu0 %v386
        %492 = vmatpush.msra.mxu0 %v385
        %493 = vmatpush.msra.mxu0 %v384
        %494 = vmatmul.f32.gmra.mxu0 %v476
        %v495 = vpop.f32.mrf.mxu0
        %v496 = vadd.f32 %v388, %v495
        %497 = vdwg.mxu0
        %v499 = vrot.slane %v496, 7
        %v501 = vadd.f32 %v382, %v499
        %v502 = vxor.u32 %v501, 2147483648
        %v503 = vmul.f32 %v502, 1.442695
        %v504 = vpow.pop %v503
        %v505 = vadd.f32 %v504, 1.0
        %v506 = vrcp.pop %v505
        %v507 = vmul.f32 %v505, %v506
        %v508 = vsub.f32 1.0, %v507
        %v509 = vmul.f32 %v506, %v508
        %v510 = vadd.f32 %v506, %v509
        %vm511 = vweird.f32 %v505
        %vm512 = vweird.f32 %v506
        %vm513 = vmor %vm511, %vm512
        %v514 = vsel %vm513, %v506, %v510
        %v515 = vand.u32 2147483647, %v505
        %vm516 = vcmp.eq.f32.partialorder %v515, 8.507059e+37
        %v517 = vand.u32 %v505, 2147483648
        %v518 = vor.u32 1.1754944e-38, %v517
        %v519 = vsel %vm516, %v518, %v514
        %v520 = vmul.f32 1.0, %v519
        %521 = vrot.lane.b32.xlu0 %v499, 64
        %v522 = vpop.permute.xlu0 %521
        %v524 = vmul.f32 %v520, %v522
        %526 = vrot.lane.b32.xlu0 %v524, 64
        %v527 = vpop.permute.xlu0 %526
        %v529 = vadd.f32 %v382, %v527
        %v530 = vtanh.pop %v529
        %v531 = vsub.f32 1.0, %v520
        %533 = vrot.lane.b32.xlu0 %v530, 96
        %v534 = vpop.permute.xlu0 %533
        %v536 = vmul.f32 %v531, %v534
        %v537 = vrot.slane %v461, 7
        %v539 = vmul.f32 %v520, %v537
        %v540 = vadd.f32 %v536, %v539
        %s541 = sadd.s32 %s456, 1
        %p542 = scmp.lt.s32.totalorder %s541, 20
        %s543 = scalar_select %p542, 1, 0
        %v544 = vstv %s543
        %vm545 = vcmp.eq.s32.totalorder %v544, 1
        %v546 = vsel %vm545, %v540, %v537
        %v547 = vpack.c.bf16 %v546, %v546
        %549 = vrot.lane.b32.xlu0 %v547, 96
        %v550 = vpop.permute.xlu0 %549
        %vm552 = vsmask.f32 7938
        %vm553 = vmand %vm467, %vm552
        %v554 = vld [vmem:[%s340] sm:$0x1]
        %v555 = vsel %vm553, %v550, %v554
        %556 = vst [vmem:[%s340] sm:$0x1] %v555
        %v558 = vrot.slane %v546, 1
        %559 = vrot.lane.b32.xlu0 %v558, 96
        %v560 = vpop.permute.xlu0 %559
        %v561 = vsel %vm360, %v560, 0
        %563 = vmatpush.msra.mxu0 0.0
        %564 = vmatpush.msra.mxu0 0.0
        %565 = vmatpush.msra.mxu0 0.0
        %566 = vmatpush.msra.mxu0 0.0
        %567 = vmatpush.msra.mxu0 0.0
        %568 = vmatpush.msra.mxu0 0.0
        %569 = vmatpush.msra.mxu0 0.0
        %570 = vmatpush.msra.mxu0 0.0
        %571 = vmatpush.msra.mxu0 0.0
        %572 = vmatpush.msra.mxu0 0.0
        %573 = vmatpush.msra.mxu0 0.0
        %574 = vmatpush.msra.mxu0 0.0
        %575 = vmatpush.msra.mxu0 %v387
        %576 = vmatpush.msra.mxu0 %v386
        %577 = vmatpush.msra.mxu0 %v385
        %578 = vmatpush.msra.mxu0 %v384
        %579 = vmatmul.f32.gmra.mxu0 %v561
        %v580 = vpop.f32.mrf.mxu0
        %v581 = vadd.f32 %v388, %v580
        %582 = vdwg.mxu0
        %v584 = vrot.slane %v581, 6
        %v586 = vadd.f32 %v382, %v584
        %v587 = vxor.u32 %v586, 2147483648
        %v588 = vmul.f32 %v587, 1.442695
        %v589 = vpow.pop %v588
        %v590 = vadd.f32 %v589, 1.0
        %v591 = vrcp.pop %v590
        %v592 = vmul.f32 %v590, %v591
        %v593 = vsub.f32 1.0, %v592
        %v594 = vmul.f32 %v591, %v593
        %v595 = vadd.f32 %v591, %v594
        %vm596 = vweird.f32 %v590
        %vm597 = vweird.f32 %v591
        %vm598 = vmor %vm596, %vm597
        %v599 = vsel %vm598, %v591, %v595
        %v600 = vand.u32 2147483647, %v590
        %vm601 = vcmp.eq.f32.partialorder %v600, 8.507059e+37
        %v602 = vand.u32 %v590, 2147483648
        %v603 = vor.u32 1.1754944e-38, %v602
        %v604 = vsel %vm601, %v603, %v599
        %v605 = vmul.f32 1.0, %v604
        %606 = vrot.lane.b32.xlu0 %v584, 64
        %v607 = vpop.permute.xlu0 %606
        %v609 = vmul.f32 %v605, %v607
        %611 = vrot.lane.b32.xlu0 %v609, 64
        %v612 = vpop.permute.xlu0 %611
        %v614 = vadd.f32 %v382, %v612
        %v615 = vtanh.pop %v614
        %v616 = vsub.f32 1.0, %v605
        %618 = vrot.lane.b32.xlu0 %v615, 96
        %v619 = vpop.permute.xlu0 %618
        %v621 = vmul.f32 %v616, %v619
        %v622 = vrot.slane %v546, 7
        %v624 = vmul.f32 %v605, %v622
        %v625 = vadd.f32 %v621, %v624
        %s626 = sadd.s32 %s456, 2
        %p627 = scmp.lt.s32.totalorder %s626, 20
        %s628 = scalar_select %p627, 1, 0
        %v629 = vstv %s628
        %vm630 = vcmp.eq.s32.totalorder %v629, 1
        %v631 = vsel %vm630, %v625, %v622
        %v632 = vpack.c.bf16 %v631, %v631
        %634 = vrot.lane.b32.xlu0 %v632, 96
        %v635 = vpop.permute.xlu0 %634
        %vm637 = vcmask 254977
        %vm638 = vsmask.f32 1280
        %vm639 = vmand %vm637, %vm638
        %v640 = vld [vmem:[%s340] sm:$0x2]
        %v641 = vsel %vm639, %v635, %v640
        %642 = vst [vmem:[%s340] sm:$0x2] %v641
        %v644 = vrot.slane %v631, 2
        %645 = vrot.lane.b32.xlu0 %v644, 96
        %v646 = vpop.permute.xlu0 %645
        %v647 = vsel %vm360, %v646, 0
        %649 = vmatpush.msra.mxu0 0.0
        %650 = vmatpush.msra.mxu0 0.0
        %651 = vmatpush.msra.mxu0 0.0
        %652 = vmatpush.msra.mxu0 0.0
        %653 = vmatpush.msra.mxu0 0.0
        %654 = vmatpush.msra.mxu0 0.0
        %655 = vmatpush.msra.mxu0 0.0
        %656 = vmatpush.msra.mxu0 0.0
        %657 = vmatpush.msra.mxu0 0.0
        %658 = vmatpush.msra.mxu0 0.0
        %659 = vmatpush.msra.mxu0 0.0
        %660 = vmatpush.msra.mxu0 0.0
        %661 = vmatpush.msra.mxu0 %v387
        %662 = vmatpush.msra.mxu0 %v386
        %663 = vmatpush.msra.mxu0 %v385
        %664 = vmatpush.msra.mxu0 %v384
        %665 = vmatmul.f32.gmra.mxu0 %v647
        %v666 = vpop.f32.mrf.mxu0
        %v667 = vadd.f32 %v388, %v666
        %668 = vdwg.mxu0
        %v670 = vrot.slane %v667, 5
        %v672 = vadd.f32 %v382, %v670
        %v673 = vxor.u32 %v672, 2147483648
        %v674 = vmul.f32 %v673, 1.442695
        %v675 = vpow.pop %v674
        %v676 = vadd.f32 %v675, 1.0
        %v677 = vrcp.pop %v676
        %v678 = vmul.f32 %v676, %v677
        %v679 = vsub.f32 1.0, %v678
        %v680 = vmul.f32 %v677, %v679
        %v681 = vadd.f32 %v677, %v680
        %vm682 = vweird.f32 %v676
        %vm683 = vweird.f32 %v677
        %vm684 = vmor %vm682, %vm683
        %v685 = vsel %vm684, %v677, %v681
        %v686 = vand.u32 2147483647, %v676
        %vm687 = vcmp.eq.f32.partialorder %v686, 8.507059e+37
        %v688 = vand.u32 %v676, 2147483648
        %v689 = vor.u32 1.1754944e-38, %v688
        %v690 = vsel %vm687, %v689, %v685
        %v691 = vmul.f32 1.0, %v690
        %692 = vrot.lane.b32.xlu0 %v670, 64
        %v693 = vpop.permute.xlu0 %692
        %v695 = vmul.f32 %v691, %v693
        %697 = vrot.lane.b32.xlu0 %v695, 64
        %v698 = vpop.permute.xlu0 %697
        %v700 = vadd.f32 %v382, %v698
        %v701 = vtanh.pop %v700
        %v702 = vsub.f32 1.0, %v691
        %704 = vrot.lane.b32.xlu0 %v701, 96
        %v705 = vpop.permute.xlu0 %704
        %v707 = vmul.f32 %v702, %v705
        %v708 = vrot.slane %v631, 7
        %v710 = vmul.f32 %v691, %v708
        %v711 = vadd.f32 %v707, %v710
        %s712 = sadd.s32 %s456, 3
        %p713 = scmp.lt.s32.totalorder %s712, 20
        %s714 = scalar_select %p713, 1, 0
        %v715 = vstv %s714
        %vm716 = vcmp.eq.s32.totalorder %v715, 1
        %v717 = vsel %vm716, %v711, %v708
        %v718 = vpack.c.bf16 %v717, %v717
        %720 = vrot.lane.b32.xlu0 %v718, 96
        %v721 = vpop.permute.xlu0 %720
        %vm723 = vsmask.f32 7942
        %vm724 = vmand %vm637, %vm723
        %v725 = vld [vmem:[%s340] sm:$0x2]
        %v726 = vsel %vm724, %v721, %v725
        %727 = vst [vmem:[%s340] sm:$0x2] %v726
        %v729 = vrot.slane %v717, 3
        %730 = vrot.lane.b32.xlu0 %v729, 96
        %v731 = vpop.permute.xlu0 %730
        %v732 = vsel %vm360, %v731, 0
        %734 = vmatpush.msra.mxu0 0.0
        %735 = vmatpush.msra.mxu0 0.0
        %736 = vmatpush.msra.mxu0 0.0
        %737 = vmatpush.msra.mxu0 0.0
        %738 = vmatpush.msra.mxu0 0.0
        %739 = vmatpush.msra.mxu0 0.0
        %740 = vmatpush.msra.mxu0 0.0
        %741 = vmatpush.msra.mxu0 0.0
        %742 = vmatpush.msra.mxu0 0.0
        %743 = vmatpush.msra.mxu0 0.0
        %744 = vmatpush.msra.mxu0 0.0
        %745 = vmatpush.msra.mxu0 0.0
        %746 = vmatpush.msra.mxu0 %v387
        %747 = vmatpush.msra.mxu0 %v386
        %748 = vmatpush.msra.mxu0 %v385
        %749 = vmatpush.msra.mxu0 %v384
        %750 = vmatmul.f32.gmra.mxu0 %v732
        %v751 = vpop.f32.mrf.mxu0
        %v752 = vadd.f32 %v388, %v751
        %753 = vdwg.mxu0
        %v755 = vrot.slane %v752, 4
        %v757 = vadd.f32 %v382, %v755
        %v758 = vxor.u32 %v757, 2147483648
        %v759 = vmul.f32 %v758, 1.442695
        %v760 = vpow.pop %v759
        %v761 = vadd.f32 %v760, 1.0
        %v762 = vrcp.pop %v761
        %v763 = vmul.f32 %v761, %v762
        %v764 = vsub.f32 1.0, %v763
        %v765 = vmul.f32 %v762, %v764
        %v766 = vadd.f32 %v762, %v765
        %vm767 = vweird.f32 %v761
        %vm768 = vweird.f32 %v762
        %vm769 = vmor %vm767, %vm768
        %v770 = vsel %vm769, %v762, %v766
        %v771 = vand.u32 2147483647, %v761
        %vm772 = vcmp.eq.f32.partialorder %v771, 8.507059e+37
        %v773 = vand.u32 %v761, 2147483648
        %v774 = vor.u32 1.1754944e-38, %v773
        %v775 = vsel %vm772, %v774, %v770
        %v776 = vmul.f32 1.0, %v775
        %777 = vrot.lane.b32.xlu0 %v755, 64
        %v778 = vpop.permute.xlu0 %777
        %v780 = vmul.f32 %v776, %v778
        %782 = vrot.lane.b32.xlu0 %v780, 64
        %v783 = vpop.permute.xlu0 %782
        %v785 = vadd.f32 %v382, %v783
        %v786 = vtanh.pop %v785
        %v787 = vsub.f32 1.0, %v776
        %789 = vrot.lane.b32.xlu0 %v786, 96
        %v790 = vpop.permute.xlu0 %789
        %v792 = vmul.f32 %v787, %v790
        %v793 = vrot.slane %v717, 7
        %v795 = vmul.f32 %v776, %v793
        %v796 = vadd.f32 %v792, %v795
        %s797 = sadd.s32 %s456, 4
        %p798 = scmp.lt.s32.totalorder %s797, 20
        %s799 = scalar_select %p798, 1, 0
        %v800 = vstv %s799
        %vm801 = vcmp.eq.s32.totalorder %v800, 1
        %v802 = vsel %vm801, %v796, %v793
        %v803 = vpack.c.bf16 %v802, %v802
        %805 = vrot.lane.b32.xlu0 %v803, 96
        %v806 = vpop.permute.xlu0 %805
        %vm808 = vcmask 256002
        %vm809 = vsmask.f32 2304
        %vm810 = vmand %vm808, %vm809
        %v811 = vld [vmem:[%s340] sm:$0x4]
        %v812 = vsel %vm810, %v806, %v811
        %813 = vst [vmem:[%s340] sm:$0x4] %v812
        %v815 = vrot.slane %v802, 4
        %816 = vrot.lane.b32.xlu0 %v815, 96
        %v817 = vpop.permute.xlu0 %816
        %v818 = vsel %vm360, %v817, 0
        %820 = vmatpush.msra.mxu0 0.0
        %821 = vmatpush.msra.mxu0 0.0
        %822 = vmatpush.msra.mxu0 0.0
        %823 = vmatpush.msra.mxu0 0.0
        %824 = vmatpush.msra.mxu0 0.0
        %825 = vmatpush.msra.mxu0 0.0
        %826 = vmatpush.msra.mxu0 0.0
        %827 = vmatpush.msra.mxu0 0.0
        %828 = vmatpush.msra.mxu0 0.0
        %829 = vmatpush.msra.mxu0 0.0
        %830 = vmatpush.msra.mxu0 0.0
        %831 = vmatpush.msra.mxu0 0.0
        %832 = vmatpush.msra.mxu0 %v387
        %833 = vmatpush.msra.mxu0 %v386
        %834 = vmatpush.msra.mxu0 %v385
        %835 = vmatpush.msra.mxu0 %v384
        %836 = vmatmul.f32.gmra.mxu0 %v818
        %v837 = vpop.f32.mrf.mxu0
        %v838 = vadd.f32 %v388, %v837
        %839 = vdwg.mxu0
        %v841 = vrot.slane %v838, 3
        %v843 = vadd.f32 %v382, %v841
        %v844 = vxor.u32 %v843, 2147483648
        %v845 = vmul.f32 %v844, 1.442695
        %v846 = vpow.pop %v845
        %v847 = vadd.f32 %v846, 1.0
        %v848 = vrcp.pop %v847
        %v849 = vmul.f32 %v847, %v848
        %v850 = vsub.f32 1.0, %v849
        %v851 = vmul.f32 %v848, %v850
        %v852 = vadd.f32 %v848, %v851
        %vm853 = vweird.f32 %v847
        %vm854 = vweird.f32 %v848
        %vm855 = vmor %vm853, %vm854
        %v856 = vsel %vm855, %v848, %v852
        %v857 = vand.u32 2147483647, %v847
        %vm858 = vcmp.eq.f32.partialorder %v857, 8.507059e+37
        %v859 = vand.u32 %v847, 2147483648
        %v860 = vor.u32 1.1754944e-38, %v859
        %v861 = vsel %vm858, %v860, %v856
        %v862 = vmul.f32 1.0, %v861
        %863 = vrot.lane.b32.xlu0 %v841, 64
        %v864 = vpop.permute.xlu0 %863
        %v866 = vmul.f32 %v862, %v864
        %868 = vrot.lane.b32.xlu0 %v866, 64
        %v869 = vpop.permute.xlu0 %868
        %v871 = vadd.f32 %v382, %v869
        %v872 = vtanh.pop %v871
        %v873 = vsub.f32 1.0, %v862
        %875 = vrot.lane.b32.xlu0 %v872, 96
        %v876 = vpop.permute.xlu0 %875
        %v878 = vmul.f32 %v873, %v876
        %v879 = vrot.slane %v802, 7
        %v881 = vmul.f32 %v862, %v879
        %v882 = vadd.f32 %v878, %v881
        %s883 = sadd.s32 %s456, 5
        %p884 = scmp.lt.s32.totalorder %s883, 20
        %s885 = scalar_select %p884, 1, 0
        %v886 = vstv %s885
        %vm887 = vcmp.eq.s32.totalorder %v886, 1
        %v888 = vsel %vm887, %v882, %v879
        %v889 = vpack.c.bf16 %v888, %v888
        %891 = vrot.lane.b32.xlu0 %v889, 96
        %v892 = vpop.permute.xlu0 %891
        %vm894 = vsmask.f32 7946
        %vm895 = vmand %vm808, %vm894
        %v896 = vld [vmem:[%s340] sm:$0x4]
        %v897 = vsel %vm895, %v892, %v896
        %898 = vst [vmem:[%s340] sm:$0x4] %v897
        %v900 = vrot.slane %v888, 5
        %901 = vrot.lane.b32.xlu0 %v900, 96
        %v902 = vpop.permute.xlu0 %901
        %v903 = vsel %vm360, %v902, 0
        %905 = vmatpush.msra.mxu0 0.0
        %906 = vmatpush.msra.mxu0 0.0
        %907 = vmatpush.msra.mxu0 0.0
        %908 = vmatpush.msra.mxu0 0.0
        %909 = vmatpush.msra.mxu0 0.0
        %910 = vmatpush.msra.mxu0 0.0
        %911 = vmatpush.msra.mxu0 0.0
        %912 = vmatpush.msra.mxu0 0.0
        %913 = vmatpush.msra.mxu0 0.0
        %914 = vmatpush.msra.mxu0 0.0
        %915 = vmatpush.msra.mxu0 0.0
        %916 = vmatpush.msra.mxu0 0.0
        %917 = vmatpush.msra.mxu0 %v387
        %918 = vmatpush.msra.mxu0 %v386
        %919 = vmatpush.msra.mxu0 %v385
        %920 = vmatpush.msra.mxu0 %v384
        %921 = vmatmul.f32.gmra.mxu0 %v903
        %v922 = vpop.f32.mrf.mxu0
        %v923 = vadd.f32 %v388, %v922
        %924 = vdwg.mxu0
        %v926 = vrot.slane %v923, 2
        %v928 = vadd.f32 %v382, %v926
        %v929 = vxor.u32 %v928, 2147483648
        %v930 = vmul.f32 %v929, 1.442695
        %v931 = vpow.pop %v930
        %v932 = vadd.f32 %v931, 1.0
        %v933 = vrcp.pop %v932
        %v934 = vmul.f32 %v932, %v933
        %v935 = vsub.f32 1.0, %v934
        %v936 = vmul.f32 %v933, %v935
        %v937 = vadd.f32 %v933, %v936
        %vm938 = vweird.f32 %v932
        %vm939 = vweird.f32 %v933
        %vm940 = vmor %vm938, %vm939
        %v941 = vsel %vm940, %v933, %v937
        %v942 = vand.u32 2147483647, %v932
        %vm943 = vcmp.eq.f32.partialorder %v942, 8.507059e+37
        %v944 = vand.u32 %v932, 2147483648
        %v945 = vor.u32 1.1754944e-38, %v944
        %v946 = vsel %vm943, %v945, %v941
        %v947 = vmul.f32 1.0, %v946
        %948 = vrot.lane.b32.xlu0 %v926, 64
        %v949 = vpop.permute.xlu0 %948
        %v951 = vmul.f32 %v947, %v949
        %953 = vrot.lane.b32.xlu0 %v951, 64
        %v954 = vpop.permute.xlu0 %953
        %v956 = vadd.f32 %v382, %v954
        %v957 = vtanh.pop %v956
        %v958 = vsub.f32 1.0, %v947
        %960 = vrot.lane.b32.xlu0 %v957, 96
        %v961 = vpop.permute.xlu0 %960
        %v963 = vmul.f32 %v958, %v961
        %v964 = vrot.slane %v888, 7
        %v966 = vmul.f32 %v947, %v964
        %v967 = vadd.f32 %v963, %v966
        %s968 = sadd.s32 %s456, 6
        %p969 = scmp.lt.s32.totalorder %s968, 20
        %s970 = scalar_select %p969, 1, 0
        %v971 = vstv %s970
        %vm972 = vcmp.eq.s32.totalorder %v971, 1
        %v973 = vsel %vm972, %v967, %v964
        %v974 = vpack.c.bf16 %v973, %v973
        %976 = vrot.lane.b32.xlu0 %v974, 96
        %v977 = vpop.permute.xlu0 %976
        %vm979 = vcmask 257027
        %vm980 = vsmask.f32 3328
        %vm981 = vmand %vm979, %vm980
        %v982 = vld [vmem:[%s340] sm:$0x8]
        %v983 = vsel %vm981, %v977, %v982
        %984 = vst [vmem:[%s340] sm:$0x8] %v983
        %v986 = vrot.slane %v973, 6
        %987 = vrot.lane.b32.xlu0 %v986, 96
        %v988 = vpop.permute.xlu0 %987
        %v989 = vsel %vm360, %v988, 0
        %991 = vmatpush.msra.mxu0 0.0
        %992 = vmatpush.msra.mxu0 0.0
        %993 = vmatpush.msra.mxu0 0.0
        %994 = vmatpush.msra.mxu0 0.0
        %995 = vmatpush.msra.mxu0 0.0
        %996 = vmatpush.msra.mxu0 0.0
        %997 = vmatpush.msra.mxu0 0.0
        %998 = vmatpush.msra.mxu0 0.0
        %999 = vmatpush.msra.mxu0 0.0
        %1000 = vmatpush.msra.mxu0 0.0
        %1001 = vmatpush.msra.mxu0 0.0
        %1002 = vmatpush.msra.mxu0 0.0
        %1003 = vmatpush.msra.mxu0 %v387
        %1004 = vmatpush.msra.mxu0 %v386
        %1005 = vmatpush.msra.mxu0 %v385
        %1006 = vmatpush.msra.mxu0 %v384
        %1007 = vmatmul.f32.gmra.mxu0 %v989
        %v1008 = vpop.f32.mrf.mxu0
        %v1009 = vadd.f32 %v388, %v1008
        %1010 = vdwg.mxu0
        %v1012 = vrot.slane %v1009, 1
        %v1014 = vadd.f32 %v382, %v1012
        %v1015 = vxor.u32 %v1014, 2147483648
        %v1016 = vmul.f32 %v1015, 1.442695
        %v1017 = vpow.pop %v1016
        %v1018 = vadd.f32 %v1017, 1.0
        %v1019 = vrcp.pop %v1018
        %v1020 = vmul.f32 %v1018, %v1019
        %v1021 = vsub.f32 1.0, %v1020
        %v1022 = vmul.f32 %v1019, %v1021
        %v1023 = vadd.f32 %v1019, %v1022
        %vm1024 = vweird.f32 %v1018
        %vm1025 = vweird.f32 %v1019
        %vm1026 = vmor %vm1024, %vm1025
        %v1027 = vsel %vm1026, %v1019, %v1023
        %v1028 = vand.u32 2147483647, %v1018
        %vm1029 = vcmp.eq.f32.partialorder %v1028, 8.507059e+37
        %v1030 = vand.u32 %v1018, 2147483648
        %v1031 = vor.u32 1.1754944e-38, %v1030
        %v1032 = vsel %vm1029, %v1031, %v1027
        %v1033 = vmul.f32 1.0, %v1032
        %1034 = vrot.lane.b32.xlu0 %v1012, 64
        %v1035 = vpop.permute.xlu0 %1034
        %v1037 = vmul.f32 %v1033, %v1035
        %1039 = vrot.lane.b32.xlu0 %v1037, 64
        %v1040 = vpop.permute.xlu0 %1039
        %v1042 = vadd.f32 %v382, %v1040
        %v1043 = vtanh.pop %v1042
        %v1044 = vsub.f32 1.0, %v1033
        %1046 = vrot.lane.b32.xlu0 %v1043, 96
        %v1047 = vpop.permute.xlu0 %1046
        %v1049 = vmul.f32 %v1044, %v1047
        %v1050 = vrot.slane %v973, 7
        %v1052 = vmul.f32 %v1033, %v1050
        %v1053 = vadd.f32 %v1049, %v1052
        %s1054 = sadd.s32 %s456, 7
        %p1055 = scmp.lt.s32.totalorder %s1054, 20
        %s1056 = scalar_select %p1055, 1, 0
        %v1057 = vstv %s1056
        %vm1058 = vcmp.eq.s32.totalorder %v1057, 1
        %v1059 = vsel %vm1058, %v1053, %v1050
        %v1060 = vpack.c.bf16 %v1059, %v1059
        %1062 = vrot.lane.b32.xlu0 %v1060, 96
        %v1063 = vpop.permute.xlu0 %1062
        %vm1065 = vsmask.f32 7950
        %vm1066 = vmand %vm979, %vm1065
        %v1067 = vld [vmem:[%s340] sm:$0x8]
        %v1068 = vsel %vm1066, %v1063, %v1067
        %1069 = vst [vmem:[%s340] sm:$0x8] %v1068
        %1071 = vrot.lane.b32.xlu0 %v1059, 96
        %v1072 = vpop.permute.xlu0 %1071
        %vm1074 = vcmask 261127
        %1075 = vst.msk [vmem:[#allocation11 - $0x7] sm:$0x80] %vm1074, %v1072
        %s1076 = sand.u32 %s167, 1
        %s1077 = scalar_lea.sflag [#allocation4], %s1076
        %s1078 = sand.u32 %s167, 1
        %s1079 = smul.addr %s1078, 4
        %s1080 = scalar_lea.vmem [#allocation10], %s1079
        // Predicated region
        $region65: #{tpu_custom_call.1} parent=43 // pred_check
          %p1081 = pneg %p177
        $region66: #{tpu_custom_call.1} parent=43 // pred_check_branch
          %1083 = sbr.rel (%p1081) target = $region68
        $region67: #{tpu_custom_call.1} parent=43 // pred_region
          %1085 = vsyncadd %s1077, 0
          %s1086 = smul.addr %s28, 4
          %s1087 = scalar_lea.hbm %s6, %s1086
          %s1089 = sshll.u32 %s1080, 4
          %s1090 = int_to_ptr.vmem [resolvable:$true] %s1089
          %s1091 = sshll.u32 %s1087, 4
          %s1092 = int_to_ptr.hbm [resolvable:$true] %s1091
          %1094 = dma.vmem_to_hbm [thread:$0]  %s1090, 64, %s1092, %s1077
        $region68: #{tpu_custom_call.1} parent=43 // pred_fallthru
          _
        // Predicated region
        $region69: #{tpu_custom_call.1} parent=43 // pred_check
          %p1095 = pneg %p198
        $region70: #{tpu_custom_call.1} parent=43 // pred_check_branch
          %1097 = sbr.rel (%p1095) target = $region72
        $region71: #{tpu_custom_call.1} parent=43 // pred_region
          %1099 = vsyncadd [#allocation12], 0
          %s1101 = sshll.u32 [#allocation11], 4
          %s1102 = int_to_ptr.vmem [resolvable:$true] %s1101
          %s1103 = sshll.u32 %s7, 4
          %s1104 = int_to_ptr.hbm [resolvable:$true] %s1103
          %1106 = dma.vmem_to_hbm [thread:$0]  %s1102, 16, %s1104, [#allocation12]
        $region72: #{tpu_custom_call.1} parent=43 // pred_fallthru
          _
        // Predicated region
        $region73: #{tpu_custom_call.1} parent=43 // pred_check
          %p1107 = pneg %p198
        $region74: #{tpu_custom_call.1} parent=43 // pred_check_branch
          %1109 = sbr.rel (%p1107) target = $region76
        $region75: #{tpu_custom_call.1} parent=43 // pred_region
          %1111 = dma.done [#allocation12], 16
        $region76: #{tpu_custom_call.1} parent=43 // pred_fallthru
          _
      $region44: #{tpu_custom_call.1} parent=5 // pred_fallthru
        _
      %p1112 = scmp.le.s32.totalorder 2, %s23
      // Predicated region
      $region77: #{tpu_custom_call.1} parent=5 // pred_check
        %p1113 = pneg %p1112
      $region78: #{tpu_custom_call.1} parent=5 // pred_check_branch
        %1115 = sbr.rel (%p1113) target = $region80
      $region79: #{tpu_custom_call.1} parent=5 // pred_region
        %s1116 = ssub.s32 %s23, 2
        // Predicated region
        $region81: #{tpu_custom_call.1} parent=79 // pred_check
          %p1117 = pneg %p183
        $region82: #{tpu_custom_call.1} parent=79 // pred_check_branch
          %1119 = sbr.rel (%p1117) target = $region84
        $region83: #{tpu_custom_call.1} parent=79 // pred_region
          %s1120 = sand.u32 %s168, 1
          %s1121 = scalar_lea.sflag [#allocation4], %s1120
          %s1122 = sand.u32 %s168, 1
          %s1123 = smul.addr %s1122, 4
          %s1124 = scalar_lea.vmem [#allocation10], %s1123
          %1126 = dma.done %s1121, 64
        $region84: #{tpu_custom_call.1} parent=79 // pred_fallthru
          _
      $region80: #{tpu_custom_call.1} parent=5 // pred_fallthru
        _
    $region6: #{tpu_custom_call.1} parent=1 // loop_footer
      %s27 = sadd.s32 1, %s23
    $region7: #{tpu_custom_call.1} parent=1 // loop_footer_branch
      %22 = sbr.rel target = $region3
    $region8: #{tpu_custom_call.1} parent=1 // loop_exit
      _
    %1127 = vsyncpa [#allocation3], 1
    %s1128 = scalar_lea.sflag [#allocation3], 1
    %1129 = vsyncpa %s1128, 1
    %1130 = vsyncpa [#allocation6], 1
    %1131 = vsyncpa [#allocation9], 1
    %1132 = vsyncpa [#allocation4], 1
    %s1133 = scalar_lea.sflag [#allocation4], 1
    %1134 = vsyncpa %s1133, 1
    %1135 = vsyncpa [#allocation12], 1

</llo_original>
